<compile_context>
chip_gen: v7x
topology: tpu7x:2x2x1
jax: 0.10.0
libtpu: 0.0.40
codegen_flags: <defaults>
</compile_context>

<pallas_src>
import jax
import jax.numpy as jnp
from jax.experimental import pallas as pl
from jax.experimental.pallas import tpu as pltpu


def _mlp_comm_kernel(x_ref, m_ref, e_ref, w_ref, b_ref, o_ref):
    # x_ref: (tmg, G*K)   packed activations (G original rows per packed row)
    # m_ref: (tmg, G*A)   packed 0/1 mask
    # e_ref: (G*A, G*K)   block-diag mask-expansion operator (exact 0/1)
    # w_ref: (G*K, G*H)   block-diag weight kron(I_G, W^T)
    # b_ref: (1,    G*H)  f32 bias tiled G times
    # o_ref: (tmg, G*H)   lane-dense output (same HBM bytes as (tm, H))
    mask_full = jnp.dot(m_ref[...], e_ref[...],
                        preferred_element_type=jnp.float32)    # exact 0/1, f32
    xm = x_ref[...].astype(jnp.float32) * mask_full            # f32 VPU multiply
    acc = jnp.dot(xm.astype(w_ref.dtype), w_ref[...],
                  preferred_element_type=jnp.float32)          # single MXU dot
    acc = acc + b_ref[...]
    o_ref[...] = jnp.maximum(acc, 0.0).astype(o_ref.dtype)


def _prep(feat_in, mask):
    """Replicates the module's feat_ax / mask handling (3-D path: d2 == 1)."""
    if feat_in.ndim == 3:
        feat_ax = feat_in[:, None, ...]
        if mask.ndim == 2:                       # (d1, A) -> (d1, 1, A)
            mask = mask[:, None, :]
    else:
        feat_ax = feat_in
    d1, d2, A, Din = feat_ax.shape
    mask_f = jnp.broadcast_to(mask.astype(jnp.float32), (d1, d2, A))
    return feat_ax, mask_f, d1, d2, A, Din


def _pick_pack_factor(H, K, itemsize):
    """Pack G original rows per kernel row, targeting a 128/256/512-lane
    output block (unmasked stores) while keeping kron(I_G, W^T) <= ~2 MiB."""
    G = 1
    for lanes in (128, 256, 512):
        if H <= lanes and lanes % H == 0:
            g = lanes // H
            if g * g * K * H * itemsize <= (2 << 20):
                G = g
    # If H does not divide 128/256/512 we fall back to G=1 (masked partial
    # stores when H < 128: correct, just slower).
    return G


def mlp_comm_forward(feat_in, mask, w, b, *, tm_rows=16384,
                     dot_dtype=jnp.bfloat16, out_dtype=None,
                     min_grid_steps=4):
    """out = ReLU((mask-masked, agent-flattened features) @ w.T + b).

    w: torch nn.Linear weight layout, shape (H, A*Din): w[h, a*Din + d]; b: (H,).
    dot_dtype: storage + MXU-input dtype for x / mask / weights (f32 accum).
               Default bf16 (MXU-native on v5e/v6e/v7x); jnp.float32 is the
               opt-in strict-parity mode.
    out_dtype: HBM dtype of the result (defaults to dot_dtype).
    tm_rows:   row tile in ORIGINAL rows (amortizes per-grid-step overhead).
    min_grid_steps: keep >= this many grid steps on large inputs so the
               "parallel" axis can feed both v7x TensorCores.
    """
    feat_ax, mask_f, d1, d2, A, Din = _prep(feat_in, mask)
    K = A * Din
    H = w.shape[0]
    assert w.shape == (H, K)

    dot_dtype = jnp.dtype(dot_dtype)
    out_dtype = dot_dtype if out_dtype is None else jnp.dtype(out_dtype)

    G = _pick_pack_factor(H, K, dot_dtype.itemsize)
    unit = 8 * G                      # packed-view alignment, in original rows

    M = d1 * d2
    # bf16 activation / mask streams: halves HBM bytes vs f32 on this
    # memory-bound kernel.
    x = feat_ax.reshape(M, K).astype(dot_dtype)
    m = mask_f.reshape(M, A).astype(dot_dtype)

    # Pad only to the packing unit (< 8*G extra rows).  The ragged last grid
    # block is handled by Pallas: OOB output rows are discarded (and sliced
    # off below); the kernel has no cross-row reductions, so garbage in the
    # OOB input rows is harmless.
    M_pad = pl.cdiv(M, unit) * unit
    if M_pad != M:
        x = jnp.pad(x, ((0, M_pad - M), (0, 0)))
        m = jnp.pad(m, ((0, M_pad - M), (0, 0)))

    Mg = M_pad // G                   # packed rows (multiple of 8)
    x_p = x.reshape(Mg, G * K)        # contiguous, lane-dense packed views
    m_p = m.reshape(Mg, G * A)

    # Row tile in packed rows: as large as requested / available, but capped
    # so large inputs still give >= min_grid_steps parallel steps (v7x's two
    # TensorCores), never dropping below ~512 packed rows of streamed I/O.
    tmg = min(max(8, (max(int(tm_rows), unit) // G // 8) * 8), Mg)
    if min_grid_steps > 1 and Mg // tmg < min_grid_steps:
        floor_tmg = min(Mg, 512)
        cap = max(floor_tmg, (Mg // min_grid_steps // 8) * 8, 8)
        tmg = min(tmg, cap)
    grid = (pl.cdiv(Mg, tmg),)

    # Small grid-invariant operands, resident in VMEM for the whole grid.
    w_kh = jnp.asarray(w, jnp.float32).T                                # (K, H)
    eye_g = jnp.eye(G, dtype=jnp.float32)
    expand = jnp.repeat(jnp.eye(A, dtype=jnp.float32), Din, axis=1)     # (A, K)
    e_big = jnp.kron(eye_g, expand).astype(dot_dtype)                   # (G*A, G*K)
    w_big = jnp.kron(eye_g, w_kh).astype(dot_dtype)                     # (G*K, G*H)
    b_big = jnp.tile(jnp.asarray(b, jnp.float32), (G,)).reshape(1, G * H)

    # Explicit VMEM budget (double-buffered streams + constants); raise the
    # scoped limit only if needed, never past v7x's 64 MiB physical VMEM.
    stream_bytes = tmg * ((G * K + G * A) * dot_dtype.itemsize
                          + G * H * out_dtype.itemsize)
    const_bytes = (e_big.size + w_big.size) * dot_dtype.itemsize + b_big.size * 4
    vmem_need = 2 * (stream_bytes + const_bytes)
    cp_kwargs = dict(dimension_semantics=("parallel",))
    if vmem_need > (24 << 20):
        cp_kwargs["vmem_limit_bytes"] = int(min(vmem_need + (8 << 20), 64 << 20))

    cost = pl.CostEstimate(
        flops=int(2 * Mg * (G * A) * (G * K) + 2 * Mg * (G * K) * (G * H)),
        transcendentals=0,
        bytes_accessed=int(Mg * (G * K + G * A) * dot_dtype.itemsize
                           + Mg * G * H * out_dtype.itemsize + const_bytes),
    )

    out_p = pl.pallas_call(
        _mlp_comm_kernel,
        out_shape=jax.ShapeDtypeStruct((Mg, G * H), out_dtype),
        grid_spec=pltpu.PrefetchScalarGridSpec(
            num_scalar_prefetch=0,
            grid=grid,
            in_specs=[
                pl.BlockSpec((tmg, G * K), lambda i: (i, 0)),      # x (packed)
                pl.BlockSpec((tmg, G * A), lambda i: (i, 0)),      # mask (packed)
                pl.BlockSpec((G * A, G * K), lambda i: (0, 0)),    # expansion op
                pl.BlockSpec((G * K, G * H), lambda i: (0, 0)),    # weight
                pl.BlockSpec((1, G * H), lambda i: (0, 0)),        # bias
            ],
            out_specs=pl.BlockSpec((tmg, G * H), lambda i: (i, 0)),
        ),
        compiler_params=pltpu.CompilerParams(**cp_kwargs),
        cost_estimate=cost,
    )(x_p, m_p, e_big, w_big, b_big)

    # Packed (Mg, G*H) is the same contiguous memory as (M_pad, H).
    out = out_p.reshape(M_pad, H)[:M]
    return out.reshape(d1, d2, H)


def _reference(feat_in, mask, w, b):
    feat_ax, mask_f, d1, d2, A, Din = _prep(feat_in, mask)
    feat_ma = (mask_f[..., None] * feat_ax.astype(jnp.float32)
               ).reshape(d1, d2, A * Din)
    y = jnp.einsum('xyk,hk->xyh', feat_ma, jnp.asarray(w, jnp.float32),
                   precision=jax.lax.Precision.HIGHEST)
    return jax.nn.relu(y + jnp.asarray(b, jnp.float32).reshape(1, 1, -1))


if __name__ == "__main__":
    # Small shapes implied by the module: dim_in=16, dim_hid=32, nagents=4.
    d1, d2, A, Din, H = 2, 8, 4, 16, 32

    key = jax.random.PRNGKey(0)
    k1, k2, k3, k4 = jax.random.split(key, 4)

    feat_in = jax.random.normal(k1, (d1, d2, A, Din), dtype=jnp.float32)
    mask = (jax.random.uniform(k2, (d1, d2, A)) > 0.3).astype(jnp.float32)

    # Deterministic synthetic nn.Linear(A*Din, H, bias=True) parameters in
    # torch layout: w[h, a*Din + d], b[h].
    bound = 1.0 / jnp.sqrt(A * Din)
    w = jax.random.uniform(k3, (H, A * Din), minval=-bound, maxval=bound,
                           dtype=jnp.float32)
    b = jax.random.uniform(k4, (H,), minval=-bound, maxval=bound,
                           dtype=jnp.float32)

    tol = dict(atol=2e-2, rtol=2e-2)   # bf16 storage + bf16 MXU inputs

    # 4-D input path, default bf16 mode.
    out = jax.block_until_ready(mlp_comm_forward(feat_in, mask, w, b))
    ref = _reference(feat_in, mask, w, b)
    assert out.shape == (d1, d2, H)
    assert out.dtype == jnp.bfloat16
    assert jnp.allclose(out.astype(jnp.float32), ref, **tol)

    # Opt-in f32 parity mode (same loose check: MXU pass-count is backend-dependent).
    out_f32 = jax.block_until_ready(
        mlp_comm_forward(feat_in, mask, w, b, dot_dtype=jnp.float32))
    assert out_f32.dtype == jnp.float32
    assert jnp.allclose(out_f32, ref, **tol)

    # 3-D input path (d2 is implicitly 1).
    feat3 = jax.random.normal(k1, (d1, A, Din), dtype=jnp.float32)
    mask3 = (jax.random.uniform(k2, (d1, A)) > 0.3).astype(jnp.float32)
    out3 = jax.block_until_ready(mlp_comm_forward(feat3, mask3, w, b))
    ref3 = _reference(feat3, mask3, w, b)
    assert out3.shape == (d1, 1, H)
    assert jnp.allclose(out3.astype(jnp.float32), ref3, **tol)

    print("KERNEL_OK")
</pallas_src>

<mosaic_0001>
module attributes {stable_mosaic.version = 11 : i64} {
  func.func @_mlp_comm_kernel(%arg0: i32, %arg1: memref<8x1024xbf16, #tpu.memory_space<vmem>>, %arg2: memref<8x64xbf16, #tpu.memory_space<vmem>>, %arg3: memref<64x1024xbf16, #tpu.memory_space<vmem>>, %arg4: memref<1024x512xbf16, #tpu.memory_space<vmem>>, %arg5: memref<1x512xf32, #tpu.memory_space<vmem>>, %arg6: memref<8x512xbf16, #tpu.memory_space<vmem>>) attributes {dimension_semantics = [#tpu.dimension_semantics<parallel>], iteration_bounds = array<i64: 1>, scalar_prefetch = 0 : i64, scratch_operands = 0 : i64, tpu.core_type = #tpu.core_type<tc>, window_params = [{transform_indices = @transform_0, window_bounds = array<i64: 8, 1024>}, {transform_indices = @transform_1, window_bounds = array<i64: 8, 64>}, {pipeline_mode = #tpu.pipeline_mode<synchronous>, transform_indices = @transform_2, window_bounds = array<i64: 64, 1024>}, {pipeline_mode = #tpu.pipeline_mode<synchronous>, transform_indices = @transform_3, window_bounds = array<i64: 1024, 512>}, {pipeline_mode = #tpu.pipeline_mode<synchronous>, transform_indices = @transform_4, window_bounds = array<i64: 1, 512>}, {transform_indices = @transform_5, window_bounds = array<i64: 8, 512>}]} {
    %c0 = arith.constant 0 : index
    %c0_0 = arith.constant 0 : index
    %0 = vector.load %arg2[%c0, %c0_0] : memref<8x64xbf16, #tpu.memory_space<vmem>>, vector<8x64xbf16>
    %c0_1 = arith.constant 0 : index
    %c0_2 = arith.constant 0 : index
    %1 = vector.load %arg3[%c0_1, %c0_2] : memref<64x1024xbf16, #tpu.memory_space<vmem>>, vector<64x1024xbf16>
    %cst = arith.constant dense<0.000000e+00> : vector<8x1024xf32>
    %2 = tpu.matmul %0, %1, %cst {dimension_numbers = #tpu.dot_dimension_numbers<[1], [0], [0], [1], [0, 0, 1, 1], [], []>} : vector<8x64xbf16>, vector<64x1024xbf16>, vector<8x1024xf32> -> vector<8x1024xf32>
    %c0_3 = arith.constant 0 : index
    %c0_4 = arith.constant 0 : index
    %3 = vector.load %arg1[%c0_3, %c0_4] : memref<8x1024xbf16, #tpu.memory_space<vmem>>, vector<8x1024xbf16>
    %4 = arith.extf %3 : vector<8x1024xbf16> to vector<8x1024xf32>
    %5 = arith.mulf %4, %2 : vector<8x1024xf32>
    %6 = arith.truncf %5 : vector<8x1024xf32> to vector<8x1024xbf16>
    %c0_5 = arith.constant 0 : index
    %c0_6 = arith.constant 0 : index
    %7 = vector.load %arg4[%c0_5, %c0_6] : memref<1024x512xbf16, #tpu.memory_space<vmem>>, vector<1024x512xbf16>
    %cst_7 = arith.constant dense<0.000000e+00> : vector<8x512xf32>
    %8 = tpu.matmul %6, %7, %cst_7 {dimension_numbers = #tpu.dot_dimension_numbers<[1], [0], [0], [1], [0, 0, 1, 1], [], []>} : vector<8x1024xbf16>, vector<1024x512xbf16>, vector<8x512xf32> -> vector<8x512xf32>
    %c0_8 = arith.constant 0 : index
    %c0_9 = arith.constant 0 : index
    %9 = vector.load %arg5[%c0_8, %c0_9] : memref<1x512xf32, #tpu.memory_space<vmem>>, vector<1x512xf32>
    %10 = vector.broadcast %9 : vector<1x512xf32> to vector<8x512xf32>
    %11 = arith.addf %8, %10 : vector<8x512xf32>
    %cst_10 = arith.constant 0.000000e+00 : f32
    %12 = vector.broadcast %cst_10 : f32 to vector<8x512xf32>
    %13 = arith.maximumf %11, %12 : vector<8x512xf32>
    %14 = arith.truncf %13 : vector<8x512xf32> to vector<8x512xbf16>
    %c0_11 = arith.constant 0 : index
    %c0_12 = arith.constant 0 : index
    %15 = vector.load %arg6[%c0_11, %c0_12] : memref<8x512xbf16, #tpu.memory_space<vmem>>, vector<8x512xbf16>
    tpu.vector_store %arg6[%c0_11, %c0_12], %14 {strides = array<i32>} : memref<8x512xbf16, #tpu.memory_space<vmem>>, vector<8x512xbf16>,
    return
  }
  func.func @transform_0(%arg0: i32) -> (i32, i32) {
    %c0_i32 = arith.constant 0 : i32
    %c0_i32_0 = arith.constant 0 : i32
    return %arg0, %c0_i32 : i32, i32
  }
  func.func @transform_1(%arg0: i32) -> (i32, i32) {
    %c0_i32 = arith.constant 0 : i32
    %c0_i32_0 = arith.constant 0 : i32
    return %arg0, %c0_i32 : i32, i32
  }
  func.func @transform_2(%arg0: i32) -> (i32, i32) {
    %c0_i32 = arith.constant 0 : i32
    %c0_i32_0 = arith.constant 0 : i32
    %c0_i32_1 = arith.constant 0 : i32
    return %c0_i32, %c0_i32_0 : i32, i32
  }
  func.func @transform_3(%arg0: i32) -> (i32, i32) {
    %c0_i32 = arith.constant 0 : i32
    %c0_i32_0 = arith.constant 0 : i32
    %c0_i32_1 = arith.constant 0 : i32
    return %c0_i32, %c0_i32_0 : i32, i32
  }
  func.func @transform_4(%arg0: i32) -> (i32, i32) {
    %c0_i32 = arith.constant 0 : i32
    %c0_i32_0 = arith.constant 0 : i32
    %c0_i32_1 = arith.constant 0 : i32
    return %c0_i32, %c0_i32_0 : i32, i32
  }
  func.func @transform_5(%arg0: i32) -> (i32, i32) {
    %c0_i32 = arith.constant 0 : i32
    %c0_i32_0 = arith.constant 0 : i32
    return %arg0, %c0_i32 : i32, i32
  }
}

</mosaic_0001>

<llo_original>
// kernel: tpu_custom_call.1
$region0: #{tpu_custom_call.1}
  #allocation0 [shape = 'u32[]', space=smem, size = 0x4, offset = 0x4, fixed_abs, tag = 'smem constant byte address 0x4 - core index']
  #allocation1 [shape = 'u32[144,128]{1,0:T(1,128)}', space=vmem, size = 0x12000, scoped, tag = 'internal scratch']
  %s0 = inlined_call_operand.hbm [shape: bf16[8,1024], index: 0, kind: input, shape index: {}]
  %s1 = inlined_call_operand.hbm [shape: bf16[8,64], index: 1, kind: input, shape index: {}]
  %s2 = inlined_call_operand.hbm [shape: bf16[64,1024], index: 2, kind: input, shape index: {}]
  %s3 = inlined_call_operand.hbm [shape: bf16[1024,512], index: 3, kind: input, shape index: {}]
  %s4 = inlined_call_operand.vmem [shape: f32[1,512], index: 4, kind: input, shape index: {}]
  %s5 = inlined_call_operand.hbm [shape: bf16[8,512], index: 5, kind: output, shape index: {}]
  %s6 = sld [smem:[#allocation0]]
  $region46: #{tpu_custom_call.1} parent=0
    _
  %s8 = ssub.s32 1, %s6
  %s9 = scalar_select 0, %s8, %s6
  $region1: #{tpu_custom_call.1} parent=0
    #allocation2 [shape = 'u8[16384]{0}', space=vmem, size = 0x4000, scoped, tag = 'input window, operand 0, single buffered']
    #allocation3 [shape = 's32[1]{0}', space=sflag, size = 0x4, scoped, tag = 'scoped memory for tpu_custom_call.1']
    #allocation4 [shape = 's32[1]{0}', space=sflag, size = 0x4, scoped, tag = 'scoped memory for tpu_custom_call.1']
    #allocation5 [shape = 'u8[2048]{0}', space=vmem, size = 0x800, scoped, tag = 'input window, operand 1, single buffered']
    #allocation6 [shape = 's32[1]{0}', space=sflag, size = 0x4, scoped, tag = 'scoped memory for tpu_custom_call.1']
    #allocation7 [shape = 'u8[131072]{0}', space=vmem, size = 0x20000, scoped, tag = 'input window, operand 2, single buffered']
    #allocation8 [shape = 'u8[1048576]{0}', space=vmem, size = 0x100000, scoped, tag = 'input window, operand 3, single buffered']
    #allocation9 [shape = 's32[1]{0}', space=sflag, size = 0x4, scoped, tag = 'scoped memory for tpu_custom_call.1']
    #allocation10 [shape = 'u8[8192]{0}', space=vmem, size = 0x2000, scoped, tag = 'output window, operand 0, single buffered']
    %10 = vsyncpa [#allocation3], 0
    %11 = vsyncpa [#allocation6], 0
    %12 = vsyncpa [#allocation9], 0
    %13 = vsyncpa [#allocation4], 0
    // Predicated region
    $region2: #{tpu_custom_call.1} parent=1 // pred_check
      _
    $region3: #{tpu_custom_call.1} parent=1 // pred_check_branch
      %15 = sbr.rel (0) target = $region5
    $region4: #{tpu_custom_call.1} parent=1 // pred_region
      %s17 = ssub.s32 512, 512
      %18 = vsyncadd [#allocation3], %s17
      %s20 = sshll.u32 [#allocation2], 4
      %s21 = int_to_ptr.vmem [resolvable:$true] %s20
      %23 = dma.hbm_to_vmem [thread:$0]  %s0, 512, %s21, [#allocation3]
    $region5: #{tpu_custom_call.1} parent=1 // pred_fallthru
      _
    // Predicated region
    $region6: #{tpu_custom_call.1} parent=1 // pred_check
      _
    $region7: #{tpu_custom_call.1} parent=1 // pred_check_branch
      %25 = sbr.rel (0) target = $region9
    $region8: #{tpu_custom_call.1} parent=1 // pred_region
      %s27 = ssub.s32 64, 64
      %28 = vsyncadd [#allocation6], %s27
      %s30 = sshll.u32 [#allocation5], 4
      %s31 = int_to_ptr.vmem [resolvable:$true] %s30
      %33 = dma.hbm_to_vmem [thread:$0]  %s1, 64, %s31, [#allocation6]
    $region9: #{tpu_custom_call.1} parent=1 // pred_fallthru
      _
    // Predicated region
    $region10: #{tpu_custom_call.1} parent=1 // pred_check
      _
    $region11: #{tpu_custom_call.1} parent=1 // pred_check_branch
      %35 = sbr.rel (0) target = $region13
    $region12: #{tpu_custom_call.1} parent=1 // pred_region
      %s37 = ssub.s32 4096, 4096
      %38 = vsyncadd [#allocation6], %s37
      %s39 = sshll.u32 [#allocation7], 4
      %s40 = int_to_ptr.vmem [resolvable:$true] %s39
      %45 = dma.hbm_to_vmem [thread:$0]  %s2, 4096, %s40, [#allocation6], 512, 512, 32
    $region13: #{tpu_custom_call.1} parent=1 // pred_fallthru
      _
    // Predicated region
    $region14: #{tpu_custom_call.1} parent=1 // pred_check
      _
    $region15: #{tpu_custom_call.1} parent=1 // pred_check_branch
      %47 = sbr.rel (0) target = $region17
    $region16: #{tpu_custom_call.1} parent=1 // pred_region
      %s49 = ssub.s32 32768, 32768
      %50 = vsyncadd [#allocation9], %s49
      %s51 = sshll.u32 [#allocation8], 4
      %s52 = int_to_ptr.vmem [resolvable:$true] %s51
      %57 = dma.hbm_to_vmem [thread:$0]  %s3, 32768, %s52, [#allocation9], 256, 256, 16
    $region17: #{tpu_custom_call.1} parent=1 // pred_fallthru
      _
    // Predicated region
    $region18: #{tpu_custom_call.1} parent=1 // pred_check
      _
    $region19: #{tpu_custom_call.1} parent=1 // pred_check_branch
      %59 = sbr.rel (0) target = $region21
    $region20: #{tpu_custom_call.1} parent=1 // pred_region
      _
    $region21: #{tpu_custom_call.1} parent=1 // pred_fallthru
      _
    // Predicated region
    $region22: #{tpu_custom_call.1} parent=1 // pred_check
      _
    $region23: #{tpu_custom_call.1} parent=1 // pred_check_branch
      %61 = sbr.rel (0) target = $region25
    $region24: #{tpu_custom_call.1} parent=1 // pred_region
      %62 = dma.done [#allocation3], 512
    $region25: #{tpu_custom_call.1} parent=1 // pred_fallthru
      _
    // Predicated region
    $region26: #{tpu_custom_call.1} parent=1 // pred_check
      _
    $region27: #{tpu_custom_call.1} parent=1 // pred_check_branch
      %64 = sbr.rel (0) target = $region29
    $region28: #{tpu_custom_call.1} parent=1 // pred_region
      %65 = dma.done [#allocation6], 64
    $region29: #{tpu_custom_call.1} parent=1 // pred_fallthru
      _
    // Predicated region
    $region30: #{tpu_custom_call.1} parent=1 // pred_check
      _
    $region31: #{tpu_custom_call.1} parent=1 // pred_check_branch
      %67 = sbr.rel (0) target = $region33
    $region32: #{tpu_custom_call.1} parent=1 // pred_region
      %68 = dma.done [#allocation6], 4096
    $region33: #{tpu_custom_call.1} parent=1 // pred_fallthru
      _
    // Predicated region
    $region34: #{tpu_custom_call.1} parent=1 // pred_check
      _
    $region35: #{tpu_custom_call.1} parent=1 // pred_check_branch
      %70 = sbr.rel (0) target = $region37
    $region36: #{tpu_custom_call.1} parent=1 // pred_region
      %71 = dma.done [#allocation9], 32768
    $region37: #{tpu_custom_call.1} parent=1 // pred_fallthru
      _
    %v73 = vld [vmem:[#allocation5] sm:$0xf]
    %v74 = vld [vmem:[#allocation7] sm:$0xff]
    %v75 = vld [vmem:[#allocation7 + $0x8] sm:$0xff]
    %v76 = vld [vmem:[#allocation7 + $0x10] sm:$0xff]
    %v77 = vld [vmem:[#allocation7 + $0x18] sm:$0xff]
    %v78 = vld [vmem:[#allocation7 + $0x20] sm:$0xff]
    %v79 = vld [vmem:[#allocation7 + $0x28] sm:$0xff]
    %v80 = vld [vmem:[#allocation7 + $0x30] sm:$0xff]
    %v81 = vld [vmem:[#allocation7 + $0x38] sm:$0xff]
    %v82 = vld [vmem:[#allocation7 + $0x40] sm:$0xff]
    %v83 = vld [vmem:[#allocation7 + $0x48] sm:$0xff]
    %v84 = vld [vmem:[#allocation7 + $0x50] sm:$0xff]
    %v85 = vld [vmem:[#allocation7 + $0x58] sm:$0xff]
    %v86 = vld [vmem:[#allocation7 + $0x60] sm:$0xff]
    %v87 = vld [vmem:[#allocation7 + $0x68] sm:$0xff]
    %v88 = vld [vmem:[#allocation7 + $0x70] sm:$0xff]
    %v89 = vld [vmem:[#allocation7 + $0x78] sm:$0xff]
    %v90 = vld [vmem:[#allocation7 + $0x80] sm:$0xff]
    %v91 = vld [vmem:[#allocation7 + $0x88] sm:$0xff]
    %v92 = vld [vmem:[#allocation7 + $0x90] sm:$0xff]
    %v93 = vld [vmem:[#allocation7 + $0x98] sm:$0xff]
    %v94 = vld [vmem:[#allocation7 + $0xa0] sm:$0xff]
    %v95 = vld [vmem:[#allocation7 + $0xa8] sm:$0xff]
    %v96 = vld [vmem:[#allocation7 + $0xb0] sm:$0xff]
    %v97 = vld [vmem:[#allocation7 + $0xb8] sm:$0xff]
    %v98 = vld [vmem:[#allocation7 + $0xc0] sm:$0xff]
    %v99 = vld [vmem:[#allocation7 + $0xc8] sm:$0xff]
    %v100 = vld [vmem:[#allocation7 + $0xd0] sm:$0xff]
    %v101 = vld [vmem:[#allocation7 + $0xd8] sm:$0xff]
    %v102 = vld [vmem:[#allocation7 + $0xe0] sm:$0xff]
    %v103 = vld [vmem:[#allocation7 + $0xe8] sm:$0xff]
    %v104 = vld [vmem:[#allocation7 + $0xf0] sm:$0xff]
    %v105 = vld [vmem:[#allocation7 + $0xf8] sm:$0xff]
    %v138 = vunpack.c.l.b16 %v74
    %v139 = vunpack.c.h.b16 %v74
    %v140 = vunpack.c.l.b16 %v75
    %v141 = vunpack.c.h.b16 %v75
    %v142 = vunpack.c.l.b16 %v76
    %v143 = vunpack.c.h.b16 %v76
    %v144 = vunpack.c.l.b16 %v77
    %v145 = vunpack.c.h.b16 %v77
    %v146 = vunpack.c.l.b16 %v78
    %v147 = vunpack.c.h.b16 %v78
    %v148 = vunpack.c.l.b16 %v79
    %v149 = vunpack.c.h.b16 %v79
    %v150 = vunpack.c.l.b16 %v80
    %v151 = vunpack.c.h.b16 %v80
    %v152 = vunpack.c.l.b16 %v81
    %v153 = vunpack.c.h.b16 %v81
    %v154 = vunpack.c.l.b16 %v82
    %v155 = vunpack.c.h.b16 %v82
    %v156 = vunpack.c.l.b16 %v83
    %v157 = vunpack.c.h.b16 %v83
    %v158 = vunpack.c.l.b16 %v84
    %v159 = vunpack.c.h.b16 %v84
    %v160 = vunpack.c.l.b16 %v85
    %v161 = vunpack.c.h.b16 %v85
    %v162 = vunpack.c.l.b16 %v86
    %v163 = vunpack.c.h.b16 %v86
    %v164 = vunpack.c.l.b16 %v87
    %v165 = vunpack.c.h.b16 %v87
    %v166 = vunpack.c.l.b16 %v88
    %v167 = vunpack.c.h.b16 %v88
    %v168 = vunpack.c.l.b16 %v89
    %v169 = vunpack.c.h.b16 %v89
    %v170 = vunpack.c.l.b16 %v90
    %v171 = vunpack.c.h.b16 %v90
    %v172 = vunpack.c.l.b16 %v91
    %v173 = vunpack.c.h.b16 %v91
    %v174 = vunpack.c.l.b16 %v92
    %v175 = vunpack.c.h.b16 %v92
    %v176 = vunpack.c.l.b16 %v93
    %v177 = vunpack.c.h.b16 %v93
    %v178 = vunpack.c.l.b16 %v94
    %v179 = vunpack.c.h.b16 %v94
    %v180 = vunpack.c.l.b16 %v95
    %v181 = vunpack.c.h.b16 %v95
    %v182 = vunpack.c.l.b16 %v96
    %v183 = vunpack.c.h.b16 %v96
    %v184 = vunpack.c.l.b16 %v97
    %v185 = vunpack.c.h.b16 %v97
    %v186 = vunpack.c.l.b16 %v98
    %v187 = vunpack.c.h.b16 %v98
    %v188 = vunpack.c.l.b16 %v99
    %v189 = vunpack.c.h.b16 %v99
    %v190 = vunpack.c.l.b16 %v100
    %v191 = vunpack.c.h.b16 %v100
    %v192 = vunpack.c.l.b16 %v101
    %v193 = vunpack.c.h.b16 %v101
    %v194 = vunpack.c.l.b16 %v102
    %v195 = vunpack.c.h.b16 %v102
    %v196 = vunpack.c.l.b16 %v103
    %v197 = vunpack.c.h.b16 %v103
    %v198 = vunpack.c.l.b16 %v104
    %v199 = vunpack.c.h.b16 %v104
    %v200 = vunpack.c.l.b16 %v105
    %v201 = vunpack.c.h.b16 %v105
    %v202 = vpack.c.b16 %v146, %v138
    %v203 = vpack.c.b16 %v147, %v139
    %v204 = vpack.c.b16 %v148, %v140
    %v205 = vpack.c.b16 %v149, %v141
    %v206 = vpack.c.b16 %v150, %v142
    %v207 = vpack.c.b16 %v151, %v143
    %v208 = vpack.c.b16 %v152, %v144
    %v209 = vpack.c.b16 %v153, %v145
    %v210 = vpack.c.b16 %v162, %v154
    %v211 = vpack.c.b16 %v163, %v155
    %v212 = vpack.c.b16 %v164, %v156
    %v213 = vpack.c.b16 %v165, %v157
    %v214 = vpack.c.b16 %v166, %v158
    %v215 = vpack.c.b16 %v167, %v159
    %v216 = vpack.c.b16 %v168, %v160
    %v217 = vpack.c.b16 %v169, %v161
    %v218 = vpack.c.b16 %v178, %v170
    %v219 = vpack.c.b16 %v179, %v171
    %v220 = vpack.c.b16 %v180, %v172
    %v221 = vpack.c.b16 %v181, %v173
    %v222 = vpack.c.b16 %v182, %v174
    %v223 = vpack.c.b16 %v183, %v175
    %v224 = vpack.c.b16 %v184, %v176
    %v225 = vpack.c.b16 %v185, %v177
    %v226 = vpack.c.b16 %v194, %v186
    %v227 = vpack.c.b16 %v195, %v187
    %v228 = vpack.c.b16 %v196, %v188
    %v229 = vpack.c.b16 %v197, %v189
    %v230 = vpack.c.b16 %v198, %v190
    %v231 = vpack.c.b16 %v199, %v191
    %v232 = vpack.c.b16 %v200, %v192
    %v233 = vpack.c.b16 %v201, %v193
    %vm266 = vcmask 523264
    %v268 = vsel %vm266, %v73, 0
    %270 = vmatprep.subr.bf16.mxu0 %v203
    %271 = vmatpush1.bf16.msra.mxu0 %v202
    %272 = vmatprep.subr.bf16.mxu0 %v211
    %273 = vmatpush1.bf16.msra.mxu0 %v210
    %274 = vmatprep.subr.bf16.mxu0 %v219
    %275 = vmatpush1.bf16.msra.mxu0 %v218
    %276 = vmatprep.subr.bf16.mxu0 %v227
    %277 = vmatpush1.bf16.msra.mxu0 %v226
    %278 = vmatprep.subr.bf16.mxu0 0
    %279 = vmatpush1.bf16.msra.mxu0 0
    %280 = vmatprep.subr.bf16.mxu0 0
    %281 = vmatpush1.bf16.msra.mxu0 0
    %282 = vmatprep.subr.bf16.mxu0 0
    %283 = vmatpush1.bf16.msra.mxu0 0
    %284 = vmatprep.subr.bf16.mxu0 0
    %285 = vmatpush1.bf16.msra.mxu0 0
    %286 = vmatprep.subr.bf16.mxu0 0
    %287 = vmatpush1.bf16.msra.mxu0 0
    %288 = vmatprep.subr.bf16.mxu0 0
    %289 = vmatpush1.bf16.msra.mxu0 0
    %290 = vmatprep.subr.bf16.mxu0 0
    %291 = vmatpush1.bf16.msra.mxu0 0
    %292 = vmatprep.subr.bf16.mxu0 0
    %293 = vmatpush1.bf16.msra.mxu0 0
    %294 = vmatprep.subr.bf16.mxu0 0
    %295 = vmatpush1.bf16.msra.mxu0 0
    %296 = vmatprep.subr.bf16.mxu0 0
    %297 = vmatpush1.bf16.msra.mxu0 0
    %298 = vmatprep.subr.bf16.mxu0 0
    %299 = vmatpush1.bf16.msra.mxu0 0
    %300 = vmatprep.subr.bf16.mxu0 0
    %301 = vmatpush1.bf16.msra.mxu0 0
    %302 = vmatprep.mubr.bf16.mxu0 0
    %303 = vmatmul.mubr.bf16.gmra.mrb[0].mxu0 %v268
    %v304 = vpop.f32.mrb[0].mxu0
    %v305 = vadd.f32 0.0, %v304
    %v306 = vpop.f32.mrb[0].mxu0
    %v307 = vadd.f32 0.0, %v306
    %v308 = vpop.f32.mrb[0].mxu0
    %v309 = vpop.f32.mrb[0].mxu0
    %310 = vdwg.mxu0
    %311 = vmatprep.subr.bf16.mxu0 %v205
    %312 = vmatpush1.bf16.msra.mxu0 %v204
    %313 = vmatprep.subr.bf16.mxu0 %v213
    %314 = vmatpush1.bf16.msra.mxu0 %v212
    %315 = vmatprep.subr.bf16.mxu0 %v221
    %316 = vmatpush1.bf16.msra.mxu0 %v220
    %317 = vmatprep.subr.bf16.mxu0 %v229
    %318 = vmatpush1.bf16.msra.mxu0 %v228
    %319 = vmatprep.subr.bf16.mxu0 0
    %320 = vmatpush1.bf16.msra.mxu0 0
    %321 = vmatprep.subr.bf16.mxu0 0
    %322 = vmatpush1.bf16.msra.mxu0 0
    %323 = vmatprep.subr.bf16.mxu0 0
    %324 = vmatpush1.bf16.msra.mxu0 0
    %325 = vmatprep.subr.bf16.mxu0 0
    %326 = vmatpush1.bf16.msra.mxu0 0
    %327 = vmatprep.subr.bf16.mxu0 0
    %328 = vmatpush1.bf16.msra.mxu0 0
    %329 = vmatprep.subr.bf16.mxu0 0
    %330 = vmatpush1.bf16.msra.mxu0 0
    %331 = vmatprep.subr.bf16.mxu0 0
    %332 = vmatpush1.bf16.msra.mxu0 0
    %333 = vmatprep.subr.bf16.mxu0 0
    %334 = vmatpush1.bf16.msra.mxu0 0
    %335 = vmatprep.subr.bf16.mxu0 0
    %336 = vmatpush1.bf16.msra.mxu0 0
    %337 = vmatprep.subr.bf16.mxu0 0
    %338 = vmatpush1.bf16.msra.mxu0 0
    %339 = vmatprep.subr.bf16.mxu0 0
    %340 = vmatpush1.bf16.msra.mxu0 0
    %341 = vmatprep.subr.bf16.mxu0 0
    %342 = vmatpush1.bf16.msra.mxu0 0
    %343 = vmatprep.mubr.bf16.mxu0 0
    %344 = vmatmul.mubr.bf16.gmra.mrb[0].mxu0 %v268
    %v345 = vpop.f32.mrb[0].mxu0
    %v346 = vadd.f32 0.0, %v345
    %v347 = vpop.f32.mrb[0].mxu0
    %v348 = vadd.f32 0.0, %v347
    %v349 = vpop.f32.mrb[0].mxu0
    %v350 = vpop.f32.mrb[0].mxu0
    %351 = vdwg.mxu0
    %352 = vmatprep.subr.bf16.mxu0 %v207
    %353 = vmatpush1.bf16.msra.mxu0 %v206
    %354 = vmatprep.subr.bf16.mxu0 %v215
    %355 = vmatpush1.bf16.msra.mxu0 %v214
    %356 = vmatprep.subr.bf16.mxu0 %v223
    %357 = vmatpush1.bf16.msra.mxu0 %v222
    %358 = vmatprep.subr.bf16.mxu0 %v231
    %359 = vmatpush1.bf16.msra.mxu0 %v230
    %360 = vmatprep.subr.bf16.mxu0 0
    %361 = vmatpush1.bf16.msra.mxu0 0
    %362 = vmatprep.subr.bf16.mxu0 0
    %363 = vmatpush1.bf16.msra.mxu0 0
    %364 = vmatprep.subr.bf16.mxu0 0
    %365 = vmatpush1.bf16.msra.mxu0 0
    %366 = vmatprep.subr.bf16.mxu0 0
    %367 = vmatpush1.bf16.msra.mxu0 0
    %368 = vmatprep.subr.bf16.mxu0 0
    %369 = vmatpush1.bf16.msra.mxu0 0
    %370 = vmatprep.subr.bf16.mxu0 0
    %371 = vmatpush1.bf16.msra.mxu0 0
    %372 = vmatprep.subr.bf16.mxu0 0
    %373 = vmatpush1.bf16.msra.mxu0 0
    %374 = vmatprep.subr.bf16.mxu0 0
    %375 = vmatpush1.bf16.msra.mxu0 0
    %376 = vmatprep.subr.bf16.mxu0 0
    %377 = vmatpush1.bf16.msra.mxu0 0
    %378 = vmatprep.subr.bf16.mxu0 0
    %379 = vmatpush1.bf16.msra.mxu0 0
    %380 = vmatprep.subr.bf16.mxu0 0
    %381 = vmatpush1.bf16.msra.mxu0 0
    %382 = vmatprep.subr.bf16.mxu0 0
    %383 = vmatpush1.bf16.msra.mxu0 0
    %384 = vmatprep.mubr.bf16.mxu0 0
    %385 = vmatmul.mubr.bf16.gmra.mrb[0].mxu0 %v268
    %v386 = vpop.f32.mrb[0].mxu0
    %v387 = vadd.f32 0.0, %v386
    %v388 = vpop.f32.mrb[0].mxu0
    %v389 = vadd.f32 0.0, %v388
    %v390 = vpop.f32.mrb[0].mxu0
    %v391 = vpop.f32.mrb[0].mxu0
    %392 = vdwg.mxu0
    %393 = vmatprep.subr.bf16.mxu0 %v209
    %394 = vmatpush1.bf16.msra.mxu0 %v208
    %395 = vmatprep.subr.bf16.mxu0 %v217
    %396 = vmatpush1.bf16.msra.mxu0 %v216
    %397 = vmatprep.subr.bf16.mxu0 %v225
    %398 = vmatpush1.bf16.msra.mxu0 %v224
    %399 = vmatprep.subr.bf16.mxu0 %v233
    %400 = vmatpush1.bf16.msra.mxu0 %v232
    %401 = vmatprep.subr.bf16.mxu0 0
    %402 = vmatpush1.bf16.msra.mxu0 0
    %403 = vmatprep.subr.bf16.mxu0 0
    %404 = vmatpush1.bf16.msra.mxu0 0
    %405 = vmatprep.subr.bf16.mxu0 0
    %406 = vmatpush1.bf16.msra.mxu0 0
    %407 = vmatprep.subr.bf16.mxu0 0
    %408 = vmatpush1.bf16.msra.mxu0 0
    %409 = vmatprep.subr.bf16.mxu0 0
    %410 = vmatpush1.bf16.msra.mxu0 0
    %411 = vmatprep.subr.bf16.mxu0 0
    %412 = vmatpush1.bf16.msra.mxu0 0
    %413 = vmatprep.subr.bf16.mxu0 0
    %414 = vmatpush1.bf16.msra.mxu0 0
    %415 = vmatprep.subr.bf16.mxu0 0
    %416 = vmatpush1.bf16.msra.mxu0 0
    %417 = vmatprep.subr.bf16.mxu0 0
    %418 = vmatpush1.bf16.msra.mxu0 0
    %419 = vmatprep.subr.bf16.mxu0 0
    %420 = vmatpush1.bf16.msra.mxu0 0
    %421 = vmatprep.subr.bf16.mxu0 0
    %422 = vmatpush1.bf16.msra.mxu0 0
    %423 = vmatprep.subr.bf16.mxu0 0
    %424 = vmatpush1.bf16.msra.mxu0 0
    %425 = vmatprep.mubr.bf16.mxu0 0
    %426 = vmatmul.mubr.bf16.gmra.mrb[0].mxu0 %v268
    %v427 = vpop.f32.mrb[0].mxu0
    %v428 = vadd.f32 0.0, %v427
    %v429 = vpop.f32.mrb[0].mxu0
    %v430 = vadd.f32 0.0, %v429
    %v431 = vpop.f32.mrb[0].mxu0
    %v432 = vpop.f32.mrb[0].mxu0
    %433 = vdwg.mxu0
    %v434 = vld [vmem:[#allocation2] sm:$0xff]
    %v435 = vld [vmem:[#allocation2 + $0x8] sm:$0xff]
    %v436 = vld [vmem:[#allocation2 + $0x10] sm:$0xff]
    %v437 = vld [vmem:[#allocation2 + $0x18] sm:$0xff]
    %v438 = vunpack.c.l.bf16 %v434
    %v439 = vunpack.c.h.bf16 %v434
    %v440 = vunpack.c.l.bf16 %v435
    %v441 = vunpack.c.h.bf16 %v435
    %v442 = vunpack.c.l.bf16 %v436
    %v443 = vunpack.c.h.bf16 %v436
    %v444 = vunpack.c.l.bf16 %v437
    %v445 = vunpack.c.h.bf16 %v437
    %v446 = vmul.f32 %v438, %v305
    %v447 = vmul.f32 %v439, %v307
    %v448 = vmul.f32 %v440, %v346
    %v449 = vmul.f32 %v441, %v348
    %v450 = vmul.f32 %v442, %v387
    %v451 = vmul.f32 %v443, %v389
    %v452 = vmul.f32 %v444, %v428
    %v453 = vmul.f32 %v445, %v430
    %v454 = vpack.c.bf16 %v446, %v446
    %v455 = vpack.c.bf16 %v447, %v447
    %v456 = vpack.c.bf16 %v448, %v448
    %v457 = vpack.c.bf16 %v449, %v449
    %v458 = vpack.c.bf16 %v450, %v450
    %v459 = vpack.c.bf16 %v451, %v451
    %v460 = vpack.c.bf16 %v452, %v452
    %v461 = vpack.c.bf16 %v453, %v453
    %v462 = vld [vmem:[#allocation8] sm:$0xff]
    %v463 = vld [vmem:[#allocation8 + $0x8] sm:$0xff]
    %v464 = vld [vmem:[#allocation8 + $0x10] sm:$0xff]
    %v465 = vld [vmem:[#allocation8 + $0x18] sm:$0xff]
    %v466 = vld [vmem:[#allocation8 + $0x20] sm:$0xff]
    %v467 = vld [vmem:[#allocation8 + $0x28] sm:$0xff]
    %v468 = vld [vmem:[#allocation8 + $0x30] sm:$0xff]
    %v469 = vld [vmem:[#allocation8 + $0x38] sm:$0xff]
    %v470 = vld [vmem:[#allocation8 + $0x40] sm:$0xff]
    %v471 = vld [vmem:[#allocation8 + $0x48] sm:$0xff]
    %v472 = vld [vmem:[#allocation8 + $0x50] sm:$0xff]
    %v473 = vld [vmem:[#allocation8 + $0x58] sm:$0xff]
    %v474 = vld [vmem:[#allocation8 + $0x60] sm:$0xff]
    %v475 = vld [vmem:[#allocation8 + $0x68] sm:$0xff]
    %v476 = vld [vmem:[#allocation8 + $0x70] sm:$0xff]
    %v477 = vld [vmem:[#allocation8 + $0x78] sm:$0xff]
    %v478 = vld [vmem:[#allocation8 + $0x80] sm:$0xff]
    %v479 = vld [vmem:[#allocation8 + $0x88] sm:$0xff]
    %v480 = vld [vmem:[#allocation8 + $0x90] sm:$0xff]
    %v481 = vld [vmem:[#allocation8 + $0x98] sm:$0xff]
    %v482 = vld [vmem:[#allocation8 + $0xa0] sm:$0xff]
    %v483 = vld [vmem:[#allocation8 + $0xa8] sm:$0xff]
    %v484 = vld [vmem:[#allocation8 + $0xb0] sm:$0xff]
    %v485 = vld [vmem:[#allocation8 + $0xb8] sm:$0xff]
    %v486 = vld [vmem:[#allocation8 + $0xc0] sm:$0xff]
    %v487 = vld [vmem:[#allocation8 + $0xc8] sm:$0xff]
    %v488 = vld [vmem:[#allocation8 + $0xd0] sm:$0xff]
    %v489 = vld [vmem:[#allocation8 + $0xd8] sm:$0xff]
    %v490 = vld [vmem:[#allocation8 + $0xe0] sm:$0xff]
    %v491 = vld [vmem:[#allocation8 + $0xe8] sm:$0xff]
    %v492 = vld [vmem:[#allocation8 + $0xf0] sm:$0xff]
    %v493 = vld [vmem:[#allocation8 + $0xf8] sm:$0xff]
    %v494 = vld [vmem:[#allocation8 + $0x100] sm:$0xff]
    %v495 = vld [vmem:[#allocation8 + $0x108] sm:$0xff]
    %v496 = vld [vmem:[#allocation8 + $0x110] sm:$0xff]
    %v497 = vld [vmem:[#allocation8 + $0x118] sm:$0xff]
    %v498 = vld [vmem:[#allocation8 + $0x120] sm:$0xff]
    %v499 = vld [vmem:[#allocation8 + $0x128] sm:$0xff]
    %v500 = vld [vmem:[#allocation8 + $0x130] sm:$0xff]
    %v501 = vld [vmem:[#allocation8 + $0x138] sm:$0xff]
    %v502 = vld [vmem:[#allocation8 + $0x140] sm:$0xff]
    %v503 = vld [vmem:[#allocation8 + $0x148] sm:$0xff]
    %v504 = vld [vmem:[#allocation8 + $0x150] sm:$0xff]
    %v505 = vld [vmem:[#allocation8 + $0x158] sm:$0xff]
    %v506 = vld [vmem:[#allocation8 + $0x160] sm:$0xff]
    %v507 = vld [vmem:[#allocation8 + $0x168] sm:$0xff]
    %v508 = vld [vmem:[#allocation8 + $0x170] sm:$0xff]
    %v509 = vld [vmem:[#allocation8 + $0x178] sm:$0xff]
    %v510 = vld [vmem:[#allocation8 + $0x180] sm:$0xff]
    %v511 = vld [vmem:[#allocation8 + $0x188] sm:$0xff]
    %v512 = vld [vmem:[#allocation8 + $0x190] sm:$0xff]
    %v513 = vld [vmem:[#allocation8 + $0x198] sm:$0xff]
    %v514 = vld [vmem:[#allocation8 + $0x1a0] sm:$0xff]
    %v515 = vld [vmem:[#allocation8 + $0x1a8] sm:$0xff]
    %v516 = vld [vmem:[#allocation8 + $0x1b0] sm:$0xff]
    %v517 = vld [vmem:[#allocation8 + $0x1b8] sm:$0xff]
    %v518 = vld [vmem:[#allocation8 + $0x1c0] sm:$0xff]
    %v519 = vld [vmem:[#allocation8 + $0x1c8] sm:$0xff]
    %v520 = vld [vmem:[#allocation8 + $0x1d0] sm:$0xff]
    %v521 = vld [vmem:[#allocation8 + $0x1d8] sm:$0xff]
    %v522 = vld [vmem:[#allocation8 + $0x1e0] sm:$0xff]
    %v523 = vld [vmem:[#allocation8 + $0x1e8] sm:$0xff]
    %v524 = vld [vmem:[#allocation8 + $0x1f0] sm:$0xff]
    %v525 = vld [vmem:[#allocation8 + $0x1f8] sm:$0xff]
    %v526 = vld [vmem:[#allocation8 + $0x200] sm:$0xff]
    %v527 = vld [vmem:[#allocation8 + $0x208] sm:$0xff]
    %v528 = vld [vmem:[#allocation8 + $0x210] sm:$0xff]
    %v529 = vld [vmem:[#allocation8 + $0x218] sm:$0xff]
    %v530 = vld [vmem:[#allocation8 + $0x220] sm:$0xff]
    %v531 = vld [vmem:[#allocation8 + $0x228] sm:$0xff]
    %v532 = vld [vmem:[#allocation8 + $0x230] sm:$0xff]
    %v533 = vld [vmem:[#allocation8 + $0x238] sm:$0xff]
    %v534 = vld [vmem:[#allocation8 + $0x240] sm:$0xff]
    %v535 = vld [vmem:[#allocation8 + $0x248] sm:$0xff]
    %v536 = vld [vmem:[#allocation8 + $0x250] sm:$0xff]
    %v537 = vld [vmem:[#allocation8 + $0x258] sm:$0xff]
    %v538 = vld [vmem:[#allocation8 + $0x260] sm:$0xff]
    %v539 = vld [vmem:[#allocation8 + $0x268] sm:$0xff]
    %v540 = vld [vmem:[#allocation8 + $0x270] sm:$0xff]
    %v541 = vld [vmem:[#allocation8 + $0x278] sm:$0xff]
    %v542 = vld [vmem:[#allocation8 + $0x280] sm:$0xff]
    %v543 = vld [vmem:[#allocation8 + $0x288] sm:$0xff]
    %v544 = vld [vmem:[#allocation8 + $0x290] sm:$0xff]
    %v545 = vld [vmem:[#allocation8 + $0x298] sm:$0xff]
    %v546 = vld [vmem:[#allocation8 + $0x2a0] sm:$0xff]
    %v547 = vld [vmem:[#allocation8 + $0x2a8] sm:$0xff]
    %v548 = vld [vmem:[#allocation8 + $0x2b0] sm:$0xff]
    %v549 = vld [vmem:[#allocation8 + $0x2b8] sm:$0xff]
    %v550 = vld [vmem:[#allocation8 + $0x2c0] sm:$0xff]
    %v551 = vld [vmem:[#allocation8 + $0x2c8] sm:$0xff]
    %v552 = vld [vmem:[#allocation8 + $0x2d0] sm:$0xff]
    %v553 = vld [vmem:[#allocation8 + $0x2d8] sm:$0xff]
    %v554 = vld [vmem:[#allocation8 + $0x2e0] sm:$0xff]
    %v555 = vld [vmem:[#allocation8 + $0x2e8] sm:$0xff]
    %v556 = vld [vmem:[#allocation8 + $0x2f0] sm:$0xff]
    %v557 = vld [vmem:[#allocation8 + $0x2f8] sm:$0xff]
    %v558 = vld [vmem:[#allocation8 + $0x300] sm:$0xff]
    %v559 = vld [vmem:[#allocation8 + $0x308] sm:$0xff]
    %v560 = vld [vmem:[#allocation8 + $0x310] sm:$0xff]
    %v561 = vld [vmem:[#allocation8 + $0x318] sm:$0xff]
    %v562 = vld [vmem:[#allocation8 + $0x320] sm:$0xff]
    %v563 = vld [vmem:[#allocation8 + $0x328] sm:$0xff]
    %v564 = vld [vmem:[#allocation8 + $0x330] sm:$0xff]
    %v565 = vld [vmem:[#allocation8 + $0x338] sm:$0xff]
    %v566 = vld [vmem:[#allocation8 + $0x340] sm:$0xff]
    %v567 = vld [vmem:[#allocation8 + $0x348] sm:$0xff]
    %v568 = vld [vmem:[#allocation8 + $0x350] sm:$0xff]
    %v569 = vld [vmem:[#allocation8 + $0x358] sm:$0xff]
    %v570 = vld [vmem:[#allocation8 + $0x360] sm:$0xff]
    %v571 = vld [vmem:[#allocation8 + $0x368] sm:$0xff]
    %v572 = vld [vmem:[#allocation8 + $0x370] sm:$0xff]
    %v573 = vld [vmem:[#allocation8 + $0x378] sm:$0xff]
    %v574 = vld [vmem:[#allocation8 + $0x380] sm:$0xff]
    %v575 = vld [vmem:[#allocation8 + $0x388] sm:$0xff]
    %v576 = vld [vmem:[#allocation8 + $0x390] sm:$0xff]
    %v577 = vld [vmem:[#allocation8 + $0x398] sm:$0xff]
    %v578 = vld [vmem:[#allocation8 + $0x3a0] sm:$0xff]
    %v579 = vld [vmem:[#allocation8 + $0x3a8] sm:$0xff]
    %v580 = vld [vmem:[#allocation8 + $0x3b0] sm:$0xff]
    %v581 = vld [vmem:[#allocation8 + $0x3b8] sm:$0xff]
    %v582 = vld [vmem:[#allocation8 + $0x3c0] sm:$0xff]
    %v583 = vld [vmem:[#allocation8 + $0x3c8] sm:$0xff]
    %v584 = vld [vmem:[#allocation8 + $0x3d0] sm:$0xff]
    %v585 = vld [vmem:[#allocation8 + $0x3d8] sm:$0xff]
    %v586 = vld [vmem:[#allocation8 + $0x3e0] sm:$0xff]
    %v587 = vld [vmem:[#allocation8 + $0x3e8] sm:$0xff]
    %v588 = vld [vmem:[#allocation8 + $0x3f0] sm:$0xff]
    %v589 = vld [vmem:[#allocation8 + $0x3f8] sm:$0xff]
    %v590 = vld [vmem:[#allocation8 + $0x400] sm:$0xff]
    %v591 = vld [vmem:[#allocation8 + $0x408] sm:$0xff]
    %v592 = vld [vmem:[#allocation8 + $0x410] sm:$0xff]
    %v593 = vld [vmem:[#allocation8 + $0x418] sm:$0xff]
    %v594 = vld [vmem:[#allocation8 + $0x420] sm:$0xff]
    %v595 = vld [vmem:[#allocation8 + $0x428] sm:$0xff]
    %v596 = vld [vmem:[#allocation8 + $0x430] sm:$0xff]
    %v597 = vld [vmem:[#allocation8 + $0x438] sm:$0xff]
    %v598 = vld [vmem:[#allocation8 + $0x440] sm:$0xff]
    %v599 = vld [vmem:[#allocation8 + $0x448] sm:$0xff]
    %v600 = vld [vmem:[#allocation8 + $0x450] sm:$0xff]
    %v601 = vld [vmem:[#allocation8 + $0x458] sm:$0xff]
    %v602 = vld [vmem:[#allocation8 + $0x460] sm:$0xff]
    %v603 = vld [vmem:[#allocation8 + $0x468] sm:$0xff]
    %v604 = vld [vmem:[#allocation8 + $0x470] sm:$0xff]
    %v605 = vld [vmem:[#allocation8 + $0x478] sm:$0xff]
    %v606 = vld [vmem:[#allocation8 + $0x480] sm:$0xff]
    %v607 = vld [vmem:[#allocation8 + $0x488] sm:$0xff]
    %v608 = vld [vmem:[#allocation8 + $0x490] sm:$0xff]
    %v609 = vld [vmem:[#allocation8 + $0x498] sm:$0xff]
    %v610 = vld [vmem:[#allocation8 + $0x4a0] sm:$0xff]
    %v611 = vld [vmem:[#allocation8 + $0x4a8] sm:$0xff]
    %v612 = vld [vmem:[#allocation8 + $0x4b0] sm:$0xff]
    %v613 = vld [vmem:[#allocation8 + $0x4b8] sm:$0xff]
    %v614 = vld [vmem:[#allocation8 + $0x4c0] sm:$0xff]
    %v615 = vld [vmem:[#allocation8 + $0x4c8] sm:$0xff]
    %v616 = vld [vmem:[#allocation8 + $0x4d0] sm:$0xff]
    %v617 = vld [vmem:[#allocation8 + $0x4d8] sm:$0xff]
    %v618 = vld [vmem:[#allocation8 + $0x4e0] sm:$0xff]
    %v619 = vld [vmem:[#allocation8 + $0x4e8] sm:$0xff]
    %v620 = vld [vmem:[#allocation8 + $0x4f0] sm:$0xff]
    %v621 = vld [vmem:[#allocation8 + $0x4f8] sm:$0xff]
    %v622 = vld [vmem:[#allocation8 + $0x500] sm:$0xff]
    %v623 = vld [vmem:[#allocation8 + $0x508] sm:$0xff]
    %v624 = vld [vmem:[#allocation8 + $0x510] sm:$0xff]
    %v625 = vld [vmem:[#allocation8 + $0x518] sm:$0xff]
    %v626 = vld [vmem:[#allocation8 + $0x520] sm:$0xff]
    %v627 = vld [vmem:[#allocation8 + $0x528] sm:$0xff]
    %v628 = vld [vmem:[#allocation8 + $0x530] sm:$0xff]
    %v629 = vld [vmem:[#allocation8 + $0x538] sm:$0xff]
    %v630 = vld [vmem:[#allocation8 + $0x540] sm:$0xff]
    %v631 = vld [vmem:[#allocation8 + $0x548] sm:$0xff]
    %v632 = vld [vmem:[#allocation8 + $0x550] sm:$0xff]
    %v633 = vld [vmem:[#allocation8 + $0x558] sm:$0xff]
    %v634 = vld [vmem:[#allocation8 + $0x560] sm:$0xff]
    %v635 = vld [vmem:[#allocation8 + $0x568] sm:$0xff]
    %v636 = vld [vmem:[#allocation8 + $0x570] sm:$0xff]
    %v637 = vld [vmem:[#allocation8 + $0x578] sm:$0xff]
    %v638 = vld [vmem:[#allocation8 + $0x580] sm:$0xff]
    %v639 = vld [vmem:[#allocation8 + $0x588] sm:$0xff]
    %v640 = vld [vmem:[#allocation8 + $0x590] sm:$0xff]
    %v641 = vld [vmem:[#allocation8 + $0x598] sm:$0xff]
    %v642 = vld [vmem:[#allocation8 + $0x5a0] sm:$0xff]
    %v643 = vld [vmem:[#allocation8 + $0x5a8] sm:$0xff]
    %v644 = vld [vmem:[#allocation8 + $0x5b0] sm:$0xff]
    %v645 = vld [vmem:[#allocation8 + $0x5b8] sm:$0xff]
    %v646 = vld [vmem:[#allocation8 + $0x5c0] sm:$0xff]
    %v647 = vld [vmem:[#allocation8 + $0x5c8] sm:$0xff]
    %v648 = vld [vmem:[#allocation8 + $0x5d0] sm:$0xff]
    %v649 = vld [vmem:[#allocation8 + $0x5d8] sm:$0xff]
    %v650 = vld [vmem:[#allocation8 + $0x5e0] sm:$0xff]
    %v651 = vld [vmem:[#allocation8 + $0x5e8] sm:$0xff]
    %v652 = vld [vmem:[#allocation8 + $0x5f0] sm:$0xff]
    %v653 = vld [vmem:[#allocation8 + $0x5f8] sm:$0xff]
    %v654 = vld [vmem:[#allocation8 + $0x600] sm:$0xff]
    %v655 = vld [vmem:[#allocation8 + $0x608] sm:$0xff]
    %v656 = vld [vmem:[#allocation8 + $0x610] sm:$0xff]
    %v657 = vld [vmem:[#allocation8 + $0x618] sm:$0xff]
    %v658 = vld [vmem:[#allocation8 + $0x620] sm:$0xff]
    %v659 = vld [vmem:[#allocation8 + $0x628] sm:$0xff]
    %v660 = vld [vmem:[#allocation8 + $0x630] sm:$0xff]
    %v661 = vld [vmem:[#allocation8 + $0x638] sm:$0xff]
    %v662 = vld [vmem:[#allocation8 + $0x640] sm:$0xff]
    %v663 = vld [vmem:[#allocation8 + $0x648] sm:$0xff]
    %v664 = vld [vmem:[#allocation8 + $0x650] sm:$0xff]
    %v665 = vld [vmem:[#allocation8 + $0x658] sm:$0xff]
    %v666 = vld [vmem:[#allocation8 + $0x660] sm:$0xff]
    %v667 = vld [vmem:[#allocation8 + $0x668] sm:$0xff]
    %v668 = vld [vmem:[#allocation8 + $0x670] sm:$0xff]
    %v669 = vld [vmem:[#allocation8 + $0x678] sm:$0xff]
    %v670 = vld [vmem:[#allocation8 + $0x680] sm:$0xff]
    %v671 = vld [vmem:[#allocation8 + $0x688] sm:$0xff]
    %v672 = vld [vmem:[#allocation8 + $0x690] sm:$0xff]
    %v673 = vld [vmem:[#allocation8 + $0x698] sm:$0xff]
    %v674 = vld [vmem:[#allocation8 + $0x6a0] sm:$0xff]
    %v675 = vld [vmem:[#allocation8 + $0x6a8] sm:$0xff]
    %v676 = vld [vmem:[#allocation8 + $0x6b0] sm:$0xff]
    %v677 = vld [vmem:[#allocation8 + $0x6b8] sm:$0xff]
    %v678 = vld [vmem:[#allocation8 + $0x6c0] sm:$0xff]
    %v679 = vld [vmem:[#allocation8 + $0x6c8] sm:$0xff]
    %v680 = vld [vmem:[#allocation8 + $0x6d0] sm:$0xff]
    %v681 = vld [vmem:[#allocation8 + $0x6d8] sm:$0xff]
    %v682 = vld [vmem:[#allocation8 + $0x6e0] sm:$0xff]
    %v683 = vld [vmem:[#allocation8 + $0x6e8] sm:$0xff]
    %v684 = vld [vmem:[#allocation8 + $0x6f0] sm:$0xff]
    %v685 = vld [vmem:[#allocation8 + $0x6f8] sm:$0xff]
    %v686 = vld [vmem:[#allocation8 + $0x700] sm:$0xff]
    %v687 = vld [vmem:[#allocation8 + $0x708] sm:$0xff]
    %v688 = vld [vmem:[#allocation8 + $0x710] sm:$0xff]
    %v689 = vld [vmem:[#allocation8 + $0x718] sm:$0xff]
    %v690 = vld [vmem:[#allocation8 + $0x720] sm:$0xff]
    %v691 = vld [vmem:[#allocation8 + $0x728] sm:$0xff]
    %v692 = vld [vmem:[#allocation8 + $0x730] sm:$0xff]
    %v693 = vld [vmem:[#allocation8 + $0x738] sm:$0xff]
    %v694 = vld [vmem:[#allocation8 + $0x740] sm:$0xff]
    %v695 = vld [vmem:[#allocation8 + $0x748] sm:$0xff]
    %v696 = vld [vmem:[#allocation8 + $0x750] sm:$0xff]
    %v697 = vld [vmem:[#allocation8 + $0x758] sm:$0xff]
    %v698 = vld [vmem:[#allocation8 + $0x760] sm:$0xff]
    %v699 = vld [vmem:[#allocation8 + $0x768] sm:$0xff]
    %v700 = vld [vmem:[#allocation8 + $0x770] sm:$0xff]
    %v701 = vld [vmem:[#allocation8 + $0x778] sm:$0xff]
    %v702 = vld [vmem:[#allocation8 + $0x780] sm:$0xff]
    %v703 = vld [vmem:[#allocation8 + $0x788] sm:$0xff]
    %v704 = vld [vmem:[#allocation8 + $0x790] sm:$0xff]
    %v705 = vld [vmem:[#allocation8 + $0x798] sm:$0xff]
    %v706 = vld [vmem:[#allocation8 + $0x7a0] sm:$0xff]
    %v707 = vld [vmem:[#allocation8 + $0x7a8] sm:$0xff]
    %v708 = vld [vmem:[#allocation8 + $0x7b0] sm:$0xff]
    %v709 = vld [vmem:[#allocation8 + $0x7b8] sm:$0xff]
    %v710 = vld [vmem:[#allocation8 + $0x7c0] sm:$0xff]
    %v711 = vld [vmem:[#allocation8 + $0x7c8] sm:$0xff]
    %v712 = vld [vmem:[#allocation8 + $0x7d0] sm:$0xff]
    %v713 = vld [vmem:[#allocation8 + $0x7d8] sm:$0xff]
    %v714 = vld [vmem:[#allocation8 + $0x7e0] sm:$0xff]
    %v715 = vld [vmem:[#allocation8 + $0x7e8] sm:$0xff]
    %v716 = vld [vmem:[#allocation8 + $0x7f0] sm:$0xff]
    %v717 = vld [vmem:[#allocation8 + $0x7f8] sm:$0xff]
    %v718 = vld [vmem:[%s4] sm:$0xf]
    %v720 = vlaneseq
    %v721 = vshrl.u32 %v720, 7
    %v722 = vsub.s32 0, %v721
    %v723 = vrot.slane %v718, %v722
    %v724 = vlaneseq
    %v725 = vshrl.u32 %v724, 7
    %v726 = vsub.s32 1, %v725
    %v727 = vrot.slane %v718, %v726
    %v728 = vlaneseq
    %v729 = vshrl.u32 %v728, 7
    %v730 = vsub.s32 2, %v729
    %v731 = vrot.slane %v718, %v730
    %v732 = vlaneseq
    %v733 = vshrl.u32 %v732, 7
    %v734 = vsub.s32 3, %v733
    %v735 = vrot.slane %v718, %v734
    %v996 = vunpack.c.l.b16 %v462
    %v997 = vunpack.c.h.b16 %v462
    %v998 = vunpack.c.l.b16 %v463
    %v999 = vunpack.c.h.b16 %v463
    %v1000 = vunpack.c.l.b16 %v464
    %v1001 = vunpack.c.h.b16 %v464
    %v1002 = vunpack.c.l.b16 %v465
    %v1003 = vunpack.c.h.b16 %v465
    %v1004 = vunpack.c.l.b16 %v466
    %v1005 = vunpack.c.h.b16 %v466
    %v1006 = vunpack.c.l.b16 %v467
    %v1007 = vunpack.c.h.b16 %v467
    %v1008 = vunpack.c.l.b16 %v468
    %v1009 = vunpack.c.h.b16 %v468
    %v1010 = vunpack.c.l.b16 %v469
    %v1011 = vunpack.c.h.b16 %v469
    %v1012 = vunpack.c.l.b16 %v470
    %v1013 = vunpack.c.h.b16 %v470
    %v1014 = vunpack.c.l.b16 %v471
    %v1015 = vunpack.c.h.b16 %v471
    %v1016 = vunpack.c.l.b16 %v472
    %v1017 = vunpack.c.h.b16 %v472
    %v1018 = vunpack.c.l.b16 %v473
    %v1019 = vunpack.c.h.b16 %v473
    %v1020 = vunpack.c.l.b16 %v474
    %v1021 = vunpack.c.h.b16 %v474
    %v1022 = vunpack.c.l.b16 %v475
    %v1023 = vunpack.c.h.b16 %v475
    %v1024 = vunpack.c.l.b16 %v476
    %v1025 = vunpack.c.h.b16 %v476
    %v1026 = vunpack.c.l.b16 %v477
    %v1027 = vunpack.c.h.b16 %v477
    %v1028 = vunpack.c.l.b16 %v478
    %v1029 = vunpack.c.h.b16 %v478
    %v1030 = vunpack.c.l.b16 %v479
    %v1031 = vunpack.c.h.b16 %v479
    %v1032 = vunpack.c.l.b16 %v480
    %v1033 = vunpack.c.h.b16 %v480
    %v1034 = vunpack.c.l.b16 %v481
    %v1035 = vunpack.c.h.b16 %v481
    %v1036 = vunpack.c.l.b16 %v482
    %v1037 = vunpack.c.h.b16 %v482
    %v1038 = vunpack.c.l.b16 %v483
    %v1039 = vunpack.c.h.b16 %v483
    %v1040 = vunpack.c.l.b16 %v484
    %v1041 = vunpack.c.h.b16 %v484
    %v1042 = vunpack.c.l.b16 %v485
    %v1043 = vunpack.c.h.b16 %v485
    %v1044 = vunpack.c.l.b16 %v486
    %v1045 = vunpack.c.h.b16 %v486
    %v1046 = vunpack.c.l.b16 %v487
    %v1047 = vunpack.c.h.b16 %v487
    %v1048 = vunpack.c.l.b16 %v488
    %v1049 = vunpack.c.h.b16 %v488
    %v1050 = vunpack.c.l.b16 %v489
    %v1051 = vunpack.c.h.b16 %v489
    %v1052 = vunpack.c.l.b16 %v490
    %v1053 = vunpack.c.h.b16 %v490
    %v1054 = vunpack.c.l.b16 %v491
    %v1055 = vunpack.c.h.b16 %v491
    %v1056 = vunpack.c.l.b16 %v492
    %v1057 = vunpack.c.h.b16 %v492
    %v1058 = vunpack.c.l.b16 %v493
    %v1059 = vunpack.c.h.b16 %v493
    %v1060 = vunpack.c.l.b16 %v494
    %v1061 = vunpack.c.h.b16 %v494
    %v1062 = vunpack.c.l.b16 %v495
    %v1063 = vunpack.c.h.b16 %v495
    %v1064 = vunpack.c.l.b16 %v496
    %v1065 = vunpack.c.h.b16 %v496
    %v1066 = vunpack.c.l.b16 %v497
    %v1067 = vunpack.c.h.b16 %v497
    %v1068 = vunpack.c.l.b16 %v498
    %v1069 = vunpack.c.h.b16 %v498
    %v1070 = vunpack.c.l.b16 %v499
    %v1071 = vunpack.c.h.b16 %v499
    %v1072 = vunpack.c.l.b16 %v500
    %v1073 = vunpack.c.h.b16 %v500
    %v1074 = vunpack.c.l.b16 %v501
    %v1075 = vunpack.c.h.b16 %v501
    %v1076 = vunpack.c.l.b16 %v502
    %v1077 = vunpack.c.h.b16 %v502
    %v1078 = vunpack.c.l.b16 %v503
    %v1079 = vunpack.c.h.b16 %v503
    %v1080 = vunpack.c.l.b16 %v504
    %v1081 = vunpack.c.h.b16 %v504
    %v1082 = vunpack.c.l.b16 %v505
    %v1083 = vunpack.c.h.b16 %v505
    %v1084 = vunpack.c.l.b16 %v506
    %v1085 = vunpack.c.h.b16 %v506
    %v1086 = vunpack.c.l.b16 %v507
    %v1087 = vunpack.c.h.b16 %v507
    %v1088 = vunpack.c.l.b16 %v508
    %v1089 = vunpack.c.h.b16 %v508
    %v1090 = vunpack.c.l.b16 %v509
    %v1091 = vunpack.c.h.b16 %v509
    %v1092 = vunpack.c.l.b16 %v510
    %v1093 = vunpack.c.h.b16 %v510
    %v1094 = vunpack.c.l.b16 %v511
    %v1095 = vunpack.c.h.b16 %v511
    %v1096 = vunpack.c.l.b16 %v512
    %v1097 = vunpack.c.h.b16 %v512
    %v1098 = vunpack.c.l.b16 %v513
    %v1099 = vunpack.c.h.b16 %v513
    %v1100 = vunpack.c.l.b16 %v514
    %v1101 = vunpack.c.h.b16 %v514
    %v1102 = vunpack.c.l.b16 %v515
    %v1103 = vunpack.c.h.b16 %v515
    %v1104 = vunpack.c.l.b16 %v516
    %v1105 = vunpack.c.h.b16 %v516
    %v1106 = vunpack.c.l.b16 %v517
    %v1107 = vunpack.c.h.b16 %v517
    %v1108 = vunpack.c.l.b16 %v518
    %v1109 = vunpack.c.h.b16 %v518
    %v1110 = vunpack.c.l.b16 %v519
    %v1111 = vunpack.c.h.b16 %v519
    %v1112 = vunpack.c.l.b16 %v520
    %v1113 = vunpack.c.h.b16 %v520
    %v1114 = vunpack.c.l.b16 %v521
    %v1115 = vunpack.c.h.b16 %v521
    %v1116 = vunpack.c.l.b16 %v522
    %v1117 = vunpack.c.h.b16 %v522
    %v1118 = vunpack.c.l.b16 %v523
    %v1119 = vunpack.c.h.b16 %v523
    %v1120 = vunpack.c.l.b16 %v524
    %v1121 = vunpack.c.h.b16 %v524
    %v1122 = vunpack.c.l.b16 %v525
    %v1123 = vunpack.c.h.b16 %v525
    %v1124 = vunpack.c.l.b16 %v526
    %v1125 = vunpack.c.h.b16 %v526
    %v1126 = vunpack.c.l.b16 %v527
    %v1127 = vunpack.c.h.b16 %v527
    %v1128 = vunpack.c.l.b16 %v528
    %v1129 = vunpack.c.h.b16 %v528
    %v1130 = vunpack.c.l.b16 %v529
    %v1131 = vunpack.c.h.b16 %v529
    %v1132 = vunpack.c.l.b16 %v530
    %v1133 = vunpack.c.h.b16 %v530
    %v1134 = vunpack.c.l.b16 %v531
    %v1135 = vunpack.c.h.b16 %v531
    %v1136 = vunpack.c.l.b16 %v532
    %v1137 = vunpack.c.h.b16 %v532
    %v1138 = vunpack.c.l.b16 %v533
    %v1139 = vunpack.c.h.b16 %v533
    %v1140 = vunpack.c.l.b16 %v534
    %v1141 = vunpack.c.h.b16 %v534
    %v1142 = vunpack.c.l.b16 %v535
    %v1143 = vunpack.c.h.b16 %v535
    %v1144 = vunpack.c.l.b16 %v536
    %v1145 = vunpack.c.h.b16 %v536
    %v1146 = vunpack.c.l.b16 %v537
    %v1147 = vunpack.c.h.b16 %v537
    %v1148 = vunpack.c.l.b16 %v538
    %v1149 = vunpack.c.h.b16 %v538
    %v1150 = vunpack.c.l.b16 %v539
    %v1151 = vunpack.c.h.b16 %v539
    %v1152 = vunpack.c.l.b16 %v540
    %v1153 = vunpack.c.h.b16 %v540
    %v1154 = vunpack.c.l.b16 %v541
    %v1155 = vunpack.c.h.b16 %v541
    %v1156 = vunpack.c.l.b16 %v542
    %v1157 = vunpack.c.h.b16 %v542
    %v1158 = vunpack.c.l.b16 %v543
    %v1159 = vunpack.c.h.b16 %v543
    %v1160 = vunpack.c.l.b16 %v544
    %v1161 = vunpack.c.h.b16 %v544
    %v1162 = vunpack.c.l.b16 %v545
    %v1163 = vunpack.c.h.b16 %v545
    %v1164 = vunpack.c.l.b16 %v546
    %v1165 = vunpack.c.h.b16 %v546
    %v1166 = vunpack.c.l.b16 %v547
    %v1167 = vunpack.c.h.b16 %v547
    %v1168 = vunpack.c.l.b16 %v548
    %v1169 = vunpack.c.h.b16 %v548
    %v1170 = vunpack.c.l.b16 %v549
    %v1171 = vunpack.c.h.b16 %v549
    %v1172 = vunpack.c.l.b16 %v550
    %v1173 = vunpack.c.h.b16 %v550
    %v1174 = vunpack.c.l.b16 %v551
    %v1175 = vunpack.c.h.b16 %v551
    %v1176 = vunpack.c.l.b16 %v552
    %v1177 = vunpack.c.h.b16 %v552
    %v1178 = vunpack.c.l.b16 %v553
    %v1179 = vunpack.c.h.b16 %v553
    %v1180 = vunpack.c.l.b16 %v554
    %v1181 = vunpack.c.h.b16 %v554
    %v1182 = vunpack.c.l.b16 %v555
    %v1183 = vunpack.c.h.b16 %v555
    %v1184 = vunpack.c.l.b16 %v556
    %v1185 = vunpack.c.h.b16 %v556
    %v1186 = vunpack.c.l.b16 %v557
    %v1187 = vunpack.c.h.b16 %v557
    %v1188 = vunpack.c.l.b16 %v558
    %v1189 = vunpack.c.h.b16 %v558
    %v1190 = vunpack.c.l.b16 %v559
    %v1191 = vunpack.c.h.b16 %v559
    %v1192 = vunpack.c.l.b16 %v560
    %v1193 = vunpack.c.h.b16 %v560
    %v1194 = vunpack.c.l.b16 %v561
    %v1195 = vunpack.c.h.b16 %v561
    %v1196 = vunpack.c.l.b16 %v562
    %v1197 = vunpack.c.h.b16 %v562
    %v1198 = vunpack.c.l.b16 %v563
    %v1199 = vunpack.c.h.b16 %v563
    %v1200 = vunpack.c.l.b16 %v564
    %v1201 = vunpack.c.h.b16 %v564
    %v1202 = vunpack.c.l.b16 %v565
    %v1203 = vunpack.c.h.b16 %v565
    %v1204 = vunpack.c.l.b16 %v566
    %v1205 = vunpack.c.h.b16 %v566
    %v1206 = vunpack.c.l.b16 %v567
    %v1207 = vunpack.c.h.b16 %v567
    %v1208 = vunpack.c.l.b16 %v568
    %v1209 = vunpack.c.h.b16 %v568
    %v1210 = vunpack.c.l.b16 %v569
    %v1211 = vunpack.c.h.b16 %v569
    %v1212 = vunpack.c.l.b16 %v570
    %v1213 = vunpack.c.h.b16 %v570
    %v1214 = vunpack.c.l.b16 %v571
    %v1215 = vunpack.c.h.b16 %v571
    %v1216 = vunpack.c.l.b16 %v572
    %v1217 = vunpack.c.h.b16 %v572
    %v1218 = vunpack.c.l.b16 %v573
    %v1219 = vunpack.c.h.b16 %v573
    %v1220 = vunpack.c.l.b16 %v574
    %v1221 = vunpack.c.h.b16 %v574
    %v1222 = vunpack.c.l.b16 %v575
    %v1223 = vunpack.c.h.b16 %v575
    %v1224 = vunpack.c.l.b16 %v576
    %v1225 = vunpack.c.h.b16 %v576
    %v1226 = vunpack.c.l.b16 %v577
    %v1227 = vunpack.c.h.b16 %v577
    %v1228 = vunpack.c.l.b16 %v578
    %v1229 = vunpack.c.h.b16 %v578
    %v1230 = vunpack.c.l.b16 %v579
    %v1231 = vunpack.c.h.b16 %v579
    %v1232 = vunpack.c.l.b16 %v580
    %v1233 = vunpack.c.h.b16 %v580
    %v1234 = vunpack.c.l.b16 %v581
    %v1235 = vunpack.c.h.b16 %v581
    %v1236 = vunpack.c.l.b16 %v582
    %v1237 = vunpack.c.h.b16 %v582
    %v1238 = vunpack.c.l.b16 %v583
    %v1239 = vunpack.c.h.b16 %v583
    %v1240 = vunpack.c.l.b16 %v584
    %v1241 = vunpack.c.h.b16 %v584
    %v1242 = vunpack.c.l.b16 %v585
    %v1243 = vunpack.c.h.b16 %v585
    %v1244 = vunpack.c.l.b16 %v586
    %v1245 = vunpack.c.h.b16 %v586
    %v1246 = vunpack.c.l.b16 %v587
    %v1247 = vunpack.c.h.b16 %v587
    %v1248 = vunpack.c.l.b16 %v588
    %v1249 = vunpack.c.h.b16 %v588
    %v1250 = vunpack.c.l.b16 %v589
    %v1251 = vunpack.c.h.b16 %v589
    %v1252 = vunpack.c.l.b16 %v590
    %v1253 = vunpack.c.h.b16 %v590
    %v1254 = vunpack.c.l.b16 %v591
    %v1255 = vunpack.c.h.b16 %v591
    %v1256 = vunpack.c.l.b16 %v592
    %v1257 = vunpack.c.h.b16 %v592
    %v1258 = vunpack.c.l.b16 %v593
    %v1259 = vunpack.c.h.b16 %v593
    %v1260 = vunpack.c.l.b16 %v594
    %v1261 = vunpack.c.h.b16 %v594
    %v1262 = vunpack.c.l.b16 %v595
    %v1263 = vunpack.c.h.b16 %v595
    %v1264 = vunpack.c.l.b16 %v596
    %v1265 = vunpack.c.h.b16 %v596
    %v1266 = vunpack.c.l.b16 %v597
    %v1267 = vunpack.c.h.b16 %v597
    %v1268 = vunpack.c.l.b16 %v598
    %v1269 = vunpack.c.h.b16 %v598
    %v1270 = vunpack.c.l.b16 %v599
    %v1271 = vunpack.c.h.b16 %v599
    %v1272 = vunpack.c.l.b16 %v600
    %v1273 = vunpack.c.h.b16 %v600
    %v1274 = vunpack.c.l.b16 %v601
    %v1275 = vunpack.c.h.b16 %v601
    %v1276 = vunpack.c.l.b16 %v602
    %v1277 = vunpack.c.h.b16 %v602
    %v1278 = vunpack.c.l.b16 %v603
    %v1279 = vunpack.c.h.b16 %v603
    %v1280 = vunpack.c.l.b16 %v604
    %v1281 = vunpack.c.h.b16 %v604
    %v1282 = vunpack.c.l.b16 %v605
    %v1283 = vunpack.c.h.b16 %v605
    %v1284 = vunpack.c.l.b16 %v606
    %v1285 = vunpack.c.h.b16 %v606
    %v1286 = vunpack.c.l.b16 %v607
    %v1287 = vunpack.c.h.b16 %v607
    %v1288 = vunpack.c.l.b16 %v608
    %v1289 = vunpack.c.h.b16 %v608
    %v1290 = vunpack.c.l.b16 %v609
    %v1291 = vunpack.c.h.b16 %v609
    %v1292 = vunpack.c.l.b16 %v610
    %v1293 = vunpack.c.h.b16 %v610
    %v1294 = vunpack.c.l.b16 %v611
    %v1295 = vunpack.c.h.b16 %v611
    %v1296 = vunpack.c.l.b16 %v612
    %v1297 = vunpack.c.h.b16 %v612
    %v1298 = vunpack.c.l.b16 %v613
    %v1299 = vunpack.c.h.b16 %v613
    %v1300 = vunpack.c.l.b16 %v614
    %v1301 = vunpack.c.h.b16 %v614
    %v1302 = vunpack.c.l.b16 %v615
    %v1303 = vunpack.c.h.b16 %v615
    %v1304 = vunpack.c.l.b16 %v616
    %v1305 = vunpack.c.h.b16 %v616
    %v1306 = vunpack.c.l.b16 %v617
    %v1307 = vunpack.c.h.b16 %v617
    %v1308 = vunpack.c.l.b16 %v618
    %v1309 = vunpack.c.h.b16 %v618
    %v1310 = vunpack.c.l.b16 %v619
    %v1311 = vunpack.c.h.b16 %v619
    %v1312 = vunpack.c.l.b16 %v620
    %v1313 = vunpack.c.h.b16 %v620
    %v1314 = vunpack.c.l.b16 %v621
    %v1315 = vunpack.c.h.b16 %v621
    %v1316 = vunpack.c.l.b16 %v622
    %v1317 = vunpack.c.h.b16 %v622
    %v1318 = vunpack.c.l.b16 %v623
    %v1319 = vunpack.c.h.b16 %v623
    %v1320 = vunpack.c.l.b16 %v624
    %v1321 = vunpack.c.h.b16 %v624
    %v1322 = vunpack.c.l.b16 %v625
    %v1323 = vunpack.c.h.b16 %v625
    %v1324 = vunpack.c.l.b16 %v626
    %v1325 = vunpack.c.h.b16 %v626
    %v1326 = vunpack.c.l.b16 %v627
    %v1327 = vunpack.c.h.b16 %v627
    %v1328 = vunpack.c.l.b16 %v628
    %v1329 = vunpack.c.h.b16 %v628
    %v1330 = vunpack.c.l.b16 %v629
    %v1331 = vunpack.c.h.b16 %v629
    %v1332 = vunpack.c.l.b16 %v630
    %v1333 = vunpack.c.h.b16 %v630
    %v1334 = vunpack.c.l.b16 %v631
    %v1335 = vunpack.c.h.b16 %v631
    %v1336 = vunpack.c.l.b16 %v632
    %v1337 = vunpack.c.h.b16 %v632
    %v1338 = vunpack.c.l.b16 %v633
    %v1339 = vunpack.c.h.b16 %v633
    %v1340 = vunpack.c.l.b16 %v634
    %v1341 = vunpack.c.h.b16 %v634
    %v1342 = vunpack.c.l.b16 %v635
    %v1343 = vunpack.c.h.b16 %v635
    %v1344 = vunpack.c.l.b16 %v636
    %v1345 = vunpack.c.h.b16 %v636
    %v1346 = vunpack.c.l.b16 %v637
    %v1347 = vunpack.c.h.b16 %v637
    %v1348 = vunpack.c.l.b16 %v638
    %v1349 = vunpack.c.h.b16 %v638
    %v1350 = vunpack.c.l.b16 %v639
    %v1351 = vunpack.c.h.b16 %v639
    %v1352 = vunpack.c.l.b16 %v640
    %v1353 = vunpack.c.h.b16 %v640
    %v1354 = vunpack.c.l.b16 %v641
    %v1355 = vunpack.c.h.b16 %v641
    %v1356 = vunpack.c.l.b16 %v642
    %v1357 = vunpack.c.h.b16 %v642
    %v1358 = vunpack.c.l.b16 %v643
    %v1359 = vunpack.c.h.b16 %v643
    %v1360 = vunpack.c.l.b16 %v644
    %v1361 = vunpack.c.h.b16 %v644
    %v1362 = vunpack.c.l.b16 %v645
    %v1363 = vunpack.c.h.b16 %v645
    %v1364 = vunpack.c.l.b16 %v646
    %v1365 = vunpack.c.h.b16 %v646
    %v1366 = vunpack.c.l.b16 %v647
    %v1367 = vunpack.c.h.b16 %v647
    %v1368 = vunpack.c.l.b16 %v648
    %v1369 = vunpack.c.h.b16 %v648
    %v1370 = vunpack.c.l.b16 %v649
    %v1371 = vunpack.c.h.b16 %v649
    %v1372 = vunpack.c.l.b16 %v650
    %v1373 = vunpack.c.h.b16 %v650
    %v1374 = vunpack.c.l.b16 %v651
    %v1375 = vunpack.c.h.b16 %v651
    %v1376 = vunpack.c.l.b16 %v652
    %v1377 = vunpack.c.h.b16 %v652
    %v1378 = vunpack.c.l.b16 %v653
    %v1379 = vunpack.c.h.b16 %v653
    %v1380 = vunpack.c.l.b16 %v654
    %v1381 = vunpack.c.h.b16 %v654
    %v1382 = vunpack.c.l.b16 %v655
    %v1383 = vunpack.c.h.b16 %v655
    %v1384 = vunpack.c.l.b16 %v656
    %v1385 = vunpack.c.h.b16 %v656
    %v1386 = vunpack.c.l.b16 %v657
    %v1387 = vunpack.c.h.b16 %v657
    %v1388 = vunpack.c.l.b16 %v658
    %v1389 = vunpack.c.h.b16 %v658
    %v1390 = vunpack.c.l.b16 %v659
    %v1391 = vunpack.c.h.b16 %v659
    %v1392 = vunpack.c.l.b16 %v660
    %v1393 = vunpack.c.h.b16 %v660
    %v1394 = vunpack.c.l.b16 %v661
    %v1395 = vunpack.c.h.b16 %v661
    %v1396 = vunpack.c.l.b16 %v662
    %v1397 = vunpack.c.h.b16 %v662
    %v1398 = vunpack.c.l.b16 %v663
    %v1399 = vunpack.c.h.b16 %v663
    %v1400 = vunpack.c.l.b16 %v664
    %v1401 = vunpack.c.h.b16 %v664
    %v1402 = vunpack.c.l.b16 %v665
    %v1403 = vunpack.c.h.b16 %v665
    %v1404 = vunpack.c.l.b16 %v666
    %v1405 = vunpack.c.h.b16 %v666
    %v1406 = vunpack.c.l.b16 %v667
    %v1407 = vunpack.c.h.b16 %v667
    %v1408 = vunpack.c.l.b16 %v668
    %v1409 = vunpack.c.h.b16 %v668
    %v1410 = vunpack.c.l.b16 %v669
    %v1411 = vunpack.c.h.b16 %v669
    %v1412 = vunpack.c.l.b16 %v670
    %v1413 = vunpack.c.h.b16 %v670
    %v1414 = vunpack.c.l.b16 %v671
    %v1415 = vunpack.c.h.b16 %v671
    %v1416 = vunpack.c.l.b16 %v672
    %v1417 = vunpack.c.h.b16 %v672
    %v1418 = vunpack.c.l.b16 %v673
    %v1419 = vunpack.c.h.b16 %v673
    %v1420 = vunpack.c.l.b16 %v674
    %v1421 = vunpack.c.h.b16 %v674
    %v1422 = vunpack.c.l.b16 %v675
    %v1423 = vunpack.c.h.b16 %v675
    %v1424 = vunpack.c.l.b16 %v676
    %v1425 = vunpack.c.h.b16 %v676
    %v1426 = vunpack.c.l.b16 %v677
    %v1427 = vunpack.c.h.b16 %v677
    %v1428 = vunpack.c.l.b16 %v678
    %v1429 = vunpack.c.h.b16 %v678
    %v1430 = vunpack.c.l.b16 %v679
    %v1431 = vunpack.c.h.b16 %v679
    %v1432 = vunpack.c.l.b16 %v680
    %v1433 = vunpack.c.h.b16 %v680
    %v1434 = vunpack.c.l.b16 %v681
    %v1435 = vunpack.c.h.b16 %v681
    %v1436 = vunpack.c.l.b16 %v682
    %v1437 = vunpack.c.h.b16 %v682
    %v1438 = vunpack.c.l.b16 %v683
    %v1439 = vunpack.c.h.b16 %v683
    %v1440 = vunpack.c.l.b16 %v684
    %v1441 = vunpack.c.h.b16 %v684
    %v1442 = vunpack.c.l.b16 %v685
    %v1443 = vunpack.c.h.b16 %v685
    %v1444 = vunpack.c.l.b16 %v686
    %v1445 = vunpack.c.h.b16 %v686
    %v1446 = vunpack.c.l.b16 %v687
    %v1447 = vunpack.c.h.b16 %v687
    %v1448 = vunpack.c.l.b16 %v688
    %v1449 = vunpack.c.h.b16 %v688
    %v1450 = vunpack.c.l.b16 %v689
    %v1451 = vunpack.c.h.b16 %v689
    %v1452 = vunpack.c.l.b16 %v690
    %v1453 = vunpack.c.h.b16 %v690
    %v1454 = vunpack.c.l.b16 %v691
    %v1455 = vunpack.c.h.b16 %v691
    %v1456 = vunpack.c.l.b16 %v692
    %v1457 = vunpack.c.h.b16 %v692
    %v1458 = vunpack.c.l.b16 %v693
    %v1459 = vunpack.c.h.b16 %v693
    %v1460 = vunpack.c.l.b16 %v694
    %v1461 = vunpack.c.h.b16 %v694
    %v1462 = vunpack.c.l.b16 %v695
    %v1463 = vunpack.c.h.b16 %v695
    %v1464 = vunpack.c.l.b16 %v696
    %v1465 = vunpack.c.h.b16 %v696
    %v1466 = vunpack.c.l.b16 %v697
    %v1467 = vunpack.c.h.b16 %v697
    %v1468 = vunpack.c.l.b16 %v698
    %v1469 = vunpack.c.h.b16 %v698
    %v1470 = vunpack.c.l.b16 %v699
    %v1471 = vunpack.c.h.b16 %v699
    %v1472 = vunpack.c.l.b16 %v700
    %v1473 = vunpack.c.h.b16 %v700
    %v1474 = vunpack.c.l.b16 %v701
    %v1475 = vunpack.c.h.b16 %v701
    %v1476 = vunpack.c.l.b16 %v702
    %v1477 = vunpack.c.h.b16 %v702
    %v1478 = vunpack.c.l.b16 %v703
    %v1479 = vunpack.c.h.b16 %v703
    %v1480 = vunpack.c.l.b16 %v704
    %v1481 = vunpack.c.h.b16 %v704
    %v1482 = vunpack.c.l.b16 %v705
    %v1483 = vunpack.c.h.b16 %v705
    %v1484 = vunpack.c.l.b16 %v706
    %v1485 = vunpack.c.h.b16 %v706
    %v1486 = vunpack.c.l.b16 %v707
    %v1487 = vunpack.c.h.b16 %v707
    %v1488 = vunpack.c.l.b16 %v708
    %v1489 = vunpack.c.h.b16 %v708
    %v1490 = vunpack.c.l.b16 %v709
    %v1491 = vunpack.c.h.b16 %v709
    %v1492 = vunpack.c.l.b16 %v710
    %v1493 = vunpack.c.h.b16 %v710
    %v1494 = vunpack.c.l.b16 %v711
    %v1495 = vunpack.c.h.b16 %v711
    %v1496 = vunpack.c.l.b16 %v712
    %v1497 = vunpack.c.h.b16 %v712
    %v1498 = vunpack.c.l.b16 %v713
    %v1499 = vunpack.c.h.b16 %v713
    %v1500 = vunpack.c.l.b16 %v714
    %v1501 = vunpack.c.h.b16 %v714
    %v1502 = vunpack.c.l.b16 %v715
    %v1503 = vunpack.c.h.b16 %v715
    %v1504 = vunpack.c.l.b16 %v716
    %v1505 = vunpack.c.h.b16 %v716
    %v1506 = vunpack.c.l.b16 %v717
    %v1507 = vunpack.c.h.b16 %v717
    %v1508 = vpack.c.b16 %v1000, %v996
    %v1509 = vpack.c.b16 %v1001, %v997
    %v1510 = vpack.c.b16 %v1002, %v998
    %v1511 = vpack.c.b16 %v1003, %v999
    %v1512 = vpack.c.b16 %v1008, %v1004
    %v1513 = vpack.c.b16 %v1009, %v1005
    %v1514 = vpack.c.b16 %v1010, %v1006
    %v1515 = vpack.c.b16 %v1011, %v1007
    %v1516 = vpack.c.b16 %v1016, %v1012
    %v1517 = vpack.c.b16 %v1017, %v1013
    %v1518 = vpack.c.b16 %v1018, %v1014
    %v1519 = vpack.c.b16 %v1019, %v1015
    %v1520 = vpack.c.b16 %v1024, %v1020
    %v1521 = vpack.c.b16 %v1025, %v1021
    %v1522 = vpack.c.b16 %v1026, %v1022
    %v1523 = vpack.c.b16 %v1027, %v1023
    %v1524 = vpack.c.b16 %v1032, %v1028
    %v1525 = vpack.c.b16 %v1033, %v1029
    %v1526 = vpack.c.b16 %v1034, %v1030
    %v1527 = vpack.c.b16 %v1035, %v1031
    %v1528 = vpack.c.b16 %v1040, %v1036
    %v1529 = vpack.c.b16 %v1041, %v1037
    %v1530 = vpack.c.b16 %v1042, %v1038
    %v1531 = vpack.c.b16 %v1043, %v1039
    %v1532 = vpack.c.b16 %v1048, %v1044
    %v1533 = vpack.c.b16 %v1049, %v1045
    %v1534 = vpack.c.b16 %v1050, %v1046
    %v1535 = vpack.c.b16 %v1051, %v1047
    %v1536 = vpack.c.b16 %v1056, %v1052
    %v1537 = vpack.c.b16 %v1057, %v1053
    %v1538 = vpack.c.b16 %v1058, %v1054
    %v1539 = vpack.c.b16 %v1059, %v1055
    %v1540 = vpack.c.b16 %v1064, %v1060
    %v1541 = vpack.c.b16 %v1065, %v1061
    %v1542 = vpack.c.b16 %v1066, %v1062
    %v1543 = vpack.c.b16 %v1067, %v1063
    %v1544 = vpack.c.b16 %v1072, %v1068
    %v1545 = vpack.c.b16 %v1073, %v1069
    %v1546 = vpack.c.b16 %v1074, %v1070
    %v1547 = vpack.c.b16 %v1075, %v1071
    %v1548 = vpack.c.b16 %v1080, %v1076
    %v1549 = vpack.c.b16 %v1081, %v1077
    %v1550 = vpack.c.b16 %v1082, %v1078
    %v1551 = vpack.c.b16 %v1083, %v1079
    %v1552 = vpack.c.b16 %v1088, %v1084
    %v1553 = vpack.c.b16 %v1089, %v1085
    %v1554 = vpack.c.b16 %v1090, %v1086
    %v1555 = vpack.c.b16 %v1091, %v1087
    %v1556 = vpack.c.b16 %v1096, %v1092
    %v1557 = vpack.c.b16 %v1097, %v1093
    %v1558 = vpack.c.b16 %v1098, %v1094
    %v1559 = vpack.c.b16 %v1099, %v1095
    %v1560 = vpack.c.b16 %v1104, %v1100
    %v1561 = vpack.c.b16 %v1105, %v1101
    %v1562 = vpack.c.b16 %v1106, %v1102
    %v1563 = vpack.c.b16 %v1107, %v1103
    %v1564 = vpack.c.b16 %v1112, %v1108
    %v1565 = vpack.c.b16 %v1113, %v1109
    %v1566 = vpack.c.b16 %v1114, %v1110
    %v1567 = vpack.c.b16 %v1115, %v1111
    %v1568 = vpack.c.b16 %v1120, %v1116
    %v1569 = vpack.c.b16 %v1121, %v1117
    %v1570 = vpack.c.b16 %v1122, %v1118
    %v1571 = vpack.c.b16 %v1123, %v1119
    %v1572 = vpack.c.b16 %v1128, %v1124
    %v1573 = vpack.c.b16 %v1129, %v1125
    %v1574 = vpack.c.b16 %v1130, %v1126
    %v1575 = vpack.c.b16 %v1131, %v1127
    %v1576 = vpack.c.b16 %v1136, %v1132
    %v1577 = vpack.c.b16 %v1137, %v1133
    %v1578 = vpack.c.b16 %v1138, %v1134
    %v1579 = vpack.c.b16 %v1139, %v1135
    %v1580 = vpack.c.b16 %v1144, %v1140
    %v1581 = vpack.c.b16 %v1145, %v1141
    %v1582 = vpack.c.b16 %v1146, %v1142
    %v1583 = vpack.c.b16 %v1147, %v1143
    %v1584 = vpack.c.b16 %v1152, %v1148
    %v1585 = vpack.c.b16 %v1153, %v1149
    %v1586 = vpack.c.b16 %v1154, %v1150
    %v1587 = vpack.c.b16 %v1155, %v1151
    %v1588 = vpack.c.b16 %v1160, %v1156
    %v1589 = vpack.c.b16 %v1161, %v1157
    %v1590 = vpack.c.b16 %v1162, %v1158
    %v1591 = vpack.c.b16 %v1163, %v1159
    %v1592 = vpack.c.b16 %v1168, %v1164
    %v1593 = vpack.c.b16 %v1169, %v1165
    %v1594 = vpack.c.b16 %v1170, %v1166
    %v1595 = vpack.c.b16 %v1171, %v1167
    %v1596 = vpack.c.b16 %v1176, %v1172
    %v1597 = vpack.c.b16 %v1177, %v1173
    %v1598 = vpack.c.b16 %v1178, %v1174
    %v1599 = vpack.c.b16 %v1179, %v1175
    %v1600 = vpack.c.b16 %v1184, %v1180
    %v1601 = vpack.c.b16 %v1185, %v1181
    %v1602 = vpack.c.b16 %v1186, %v1182
    %v1603 = vpack.c.b16 %v1187, %v1183
    %v1604 = vpack.c.b16 %v1192, %v1188
    %v1605 = vpack.c.b16 %v1193, %v1189
    %v1606 = vpack.c.b16 %v1194, %v1190
    %v1607 = vpack.c.b16 %v1195, %v1191
    %v1608 = vpack.c.b16 %v1200, %v1196
    %v1609 = vpack.c.b16 %v1201, %v1197
    %v1610 = vpack.c.b16 %v1202, %v1198
    %v1611 = vpack.c.b16 %v1203, %v1199
    %v1612 = vpack.c.b16 %v1208, %v1204
    %v1613 = vpack.c.b16 %v1209, %v1205
    %v1614 = vpack.c.b16 %v1210, %v1206
    %v1615 = vpack.c.b16 %v1211, %v1207
    %v1616 = vpack.c.b16 %v1216, %v1212
    %v1617 = vpack.c.b16 %v1217, %v1213
    %v1618 = vpack.c.b16 %v1218, %v1214
    %v1619 = vpack.c.b16 %v1219, %v1215
    %v1620 = vpack.c.b16 %v1224, %v1220
    %v1621 = vpack.c.b16 %v1225, %v1221
    %v1622 = vpack.c.b16 %v1226, %v1222
    %v1623 = vpack.c.b16 %v1227, %v1223
    %v1624 = vpack.c.b16 %v1232, %v1228
    %v1625 = vpack.c.b16 %v1233, %v1229
    %v1626 = vpack.c.b16 %v1234, %v1230
    %v1627 = vpack.c.b16 %v1235, %v1231
    %v1628 = vpack.c.b16 %v1240, %v1236
    %v1629 = vpack.c.b16 %v1241, %v1237
    %v1630 = vpack.c.b16 %v1242, %v1238
    %v1631 = vpack.c.b16 %v1243, %v1239
    %v1632 = vpack.c.b16 %v1248, %v1244
    %v1633 = vpack.c.b16 %v1249, %v1245
    %v1634 = vpack.c.b16 %v1250, %v1246
    %v1635 = vpack.c.b16 %v1251, %v1247
    %v1636 = vpack.c.b16 %v1256, %v1252
    %v1637 = vpack.c.b16 %v1257, %v1253
    %v1638 = vpack.c.b16 %v1258, %v1254
    %v1639 = vpack.c.b16 %v1259, %v1255
    %v1640 = vpack.c.b16 %v1264, %v1260
    %v1641 = vpack.c.b16 %v1265, %v1261
    %v1642 = vpack.c.b16 %v1266, %v1262
    %v1643 = vpack.c.b16 %v1267, %v1263
    %v1644 = vpack.c.b16 %v1272, %v1268
    %v1645 = vpack.c.b16 %v1273, %v1269
    %v1646 = vpack.c.b16 %v1274, %v1270
    %v1647 = vpack.c.b16 %v1275, %v1271
    %v1648 = vpack.c.b16 %v1280, %v1276
    %v1649 = vpack.c.b16 %v1281, %v1277
    %v1650 = vpack.c.b16 %v1282, %v1278
    %v1651 = vpack.c.b16 %v1283, %v1279
    %v1652 = vpack.c.b16 %v1288, %v1284
    %v1653 = vpack.c.b16 %v1289, %v1285
    %v1654 = vpack.c.b16 %v1290, %v1286
    %v1655 = vpack.c.b16 %v1291, %v1287
    %v1656 = vpack.c.b16 %v1296, %v1292
    %v1657 = vpack.c.b16 %v1297, %v1293
    %v1658 = vpack.c.b16 %v1298, %v1294
    %v1659 = vpack.c.b16 %v1299, %v1295
    %v1660 = vpack.c.b16 %v1304, %v1300
    %v1661 = vpack.c.b16 %v1305, %v1301
    %v1662 = vpack.c.b16 %v1306, %v1302
    %v1663 = vpack.c.b16 %v1307, %v1303
    %v1664 = vpack.c.b16 %v1312, %v1308
    %v1665 = vpack.c.b16 %v1313, %v1309
    %v1666 = vpack.c.b16 %v1314, %v1310
    %v1667 = vpack.c.b16 %v1315, %v1311
    %v1668 = vpack.c.b16 %v1320, %v1316
    %v1669 = vpack.c.b16 %v1321, %v1317
    %v1670 = vpack.c.b16 %v1322, %v1318
    %v1671 = vpack.c.b16 %v1323, %v1319
    %v1672 = vpack.c.b16 %v1328, %v1324
    %v1673 = vpack.c.b16 %v1329, %v1325
    %v1674 = vpack.c.b16 %v1330, %v1326
    %v1675 = vpack.c.b16 %v1331, %v1327
    %v1676 = vpack.c.b16 %v1336, %v1332
    %v1677 = vpack.c.b16 %v1337, %v1333
    %v1678 = vpack.c.b16 %v1338, %v1334
    %v1679 = vpack.c.b16 %v1339, %v1335
    %v1680 = vpack.c.b16 %v1344, %v1340
    %v1681 = vpack.c.b16 %v1345, %v1341
    %v1682 = vpack.c.b16 %v1346, %v1342
    %v1683 = vpack.c.b16 %v1347, %v1343
    %v1684 = vpack.c.b16 %v1352, %v1348
    %v1685 = vpack.c.b16 %v1353, %v1349
    %v1686 = vpack.c.b16 %v1354, %v1350
    %v1687 = vpack.c.b16 %v1355, %v1351
    %v1688 = vpack.c.b16 %v1360, %v1356
    %v1689 = vpack.c.b16 %v1361, %v1357
    %v1690 = vpack.c.b16 %v1362, %v1358
    %v1691 = vpack.c.b16 %v1363, %v1359
    %v1692 = vpack.c.b16 %v1368, %v1364
    %v1693 = vpack.c.b16 %v1369, %v1365
    %v1694 = vpack.c.b16 %v1370, %v1366
    %v1695 = vpack.c.b16 %v1371, %v1367
    %v1696 = vpack.c.b16 %v1376, %v1372
    %v1697 = vpack.c.b16 %v1377, %v1373
    %v1698 = vpack.c.b16 %v1378, %v1374
    %v1699 = vpack.c.b16 %v1379, %v1375
    %v1700 = vpack.c.b16 %v1384, %v1380
    %v1701 = vpack.c.b16 %v1385, %v1381
    %v1702 = vpack.c.b16 %v1386, %v1382
    %v1703 = vpack.c.b16 %v1387, %v1383
    %v1704 = vpack.c.b16 %v1392, %v1388
    %v1705 = vpack.c.b16 %v1393, %v1389
    %v1706 = vpack.c.b16 %v1394, %v1390
    %v1707 = vpack.c.b16 %v1395, %v1391
    %v1708 = vpack.c.b16 %v1400, %v1396
    %v1709 = vpack.c.b16 %v1401, %v1397
    %v1710 = vpack.c.b16 %v1402, %v1398
    %v1711 = vpack.c.b16 %v1403, %v1399
    %v1712 = vpack.c.b16 %v1408, %v1404
    %v1713 = vpack.c.b16 %v1409, %v1405
    %v1714 = vpack.c.b16 %v1410, %v1406
    %v1715 = vpack.c.b16 %v1411, %v1407
    %v1716 = vpack.c.b16 %v1416, %v1412
    %v1717 = vpack.c.b16 %v1417, %v1413
    %v1718 = vpack.c.b16 %v1418, %v1414
    %v1719 = vpack.c.b16 %v1419, %v1415
    %v1720 = vpack.c.b16 %v1424, %v1420
    %v1721 = vpack.c.b16 %v1425, %v1421
    %v1722 = vpack.c.b16 %v1426, %v1422
    %v1723 = vpack.c.b16 %v1427, %v1423
    %v1724 = vpack.c.b16 %v1432, %v1428
    %v1725 = vpack.c.b16 %v1433, %v1429
    %v1726 = vpack.c.b16 %v1434, %v1430
    %v1727 = vpack.c.b16 %v1435, %v1431
    %v1728 = vpack.c.b16 %v1440, %v1436
    %v1729 = vpack.c.b16 %v1441, %v1437
    %v1730 = vpack.c.b16 %v1442, %v1438
    %v1731 = vpack.c.b16 %v1443, %v1439
    %v1732 = vpack.c.b16 %v1448, %v1444
    %v1733 = vpack.c.b16 %v1449, %v1445
    %v1734 = vpack.c.b16 %v1450, %v1446
    %v1735 = vpack.c.b16 %v1451, %v1447
    %v1736 = vpack.c.b16 %v1456, %v1452
    %v1737 = vpack.c.b16 %v1457, %v1453
    %v1738 = vpack.c.b16 %v1458, %v1454
    %v1739 = vpack.c.b16 %v1459, %v1455
    %v1740 = vpack.c.b16 %v1464, %v1460
    %v1741 = vpack.c.b16 %v1465, %v1461
    %v1742 = vpack.c.b16 %v1466, %v1462
    %v1743 = vpack.c.b16 %v1467, %v1463
    %v1744 = vpack.c.b16 %v1472, %v1468
    %v1745 = vpack.c.b16 %v1473, %v1469
    %v1746 = vpack.c.b16 %v1474, %v1470
    %v1747 = vpack.c.b16 %v1475, %v1471
    %v1748 = vpack.c.b16 %v1480, %v1476
    %v1749 = vpack.c.b16 %v1481, %v1477
    %v1750 = vpack.c.b16 %v1482, %v1478
    %v1751 = vpack.c.b16 %v1483, %v1479
    %v1752 = vpack.c.b16 %v1488, %v1484
    %v1753 = vpack.c.b16 %v1489, %v1485
    %v1754 = vpack.c.b16 %v1490, %v1486
    %v1755 = vpack.c.b16 %v1491, %v1487
    %v1756 = vpack.c.b16 %v1496, %v1492
    %v1757 = vpack.c.b16 %v1497, %v1493
    %v1758 = vpack.c.b16 %v1498, %v1494
    %v1759 = vpack.c.b16 %v1499, %v1495
    %v1760 = vpack.c.b16 %v1504, %v1500
    %v1761 = vpack.c.b16 %v1505, %v1501
    %v1762 = vpack.c.b16 %v1506, %v1502
    %v1763 = vpack.c.b16 %v1507, %v1503
    %2020 = vmatprep.subr.bf16.mxu0 %v1509
    %2021 = vmatpush1.bf16.msra.mxu0 %v1508
    %2022 = vmatprep.subr.bf16.mxu0 %v1513
    %2023 = vmatpush1.bf16.msra.mxu0 %v1512
    %2024 = vmatprep.subr.bf16.mxu0 %v1517
    %2025 = vmatpush1.bf16.msra.mxu0 %v1516
    %2026 = vmatprep.subr.bf16.mxu0 %v1521
    %2027 = vmatpush1.bf16.msra.mxu0 %v1520
    %2028 = vmatprep.subr.bf16.mxu0 %v1525
    %2029 = vmatpush1.bf16.msra.mxu0 %v1524
    %2030 = vmatprep.subr.bf16.mxu0 %v1529
    %2031 = vmatpush1.bf16.msra.mxu0 %v1528
    %2032 = vmatprep.subr.bf16.mxu0 %v1533
    %2033 = vmatpush1.bf16.msra.mxu0 %v1532
    %2034 = vmatprep.subr.bf16.mxu0 %v1537
    %2035 = vmatpush1.bf16.msra.mxu0 %v1536
    %2036 = vmatprep.subr.bf16.mxu0 %v1541
    %2037 = vmatpush1.bf16.msra.mxu0 %v1540
    %2038 = vmatprep.subr.bf16.mxu0 %v1545
    %2039 = vmatpush1.bf16.msra.mxu0 %v1544
    %2040 = vmatprep.subr.bf16.mxu0 %v1549
    %2041 = vmatpush1.bf16.msra.mxu0 %v1548
    %2042 = vmatprep.subr.bf16.mxu0 %v1553
    %2043 = vmatpush1.bf16.msra.mxu0 %v1552
    %2044 = vmatprep.subr.bf16.mxu0 %v1557
    %2045 = vmatpush1.bf16.msra.mxu0 %v1556
    %2046 = vmatprep.subr.bf16.mxu0 %v1561
    %2047 = vmatpush1.bf16.msra.mxu0 %v1560
    %2048 = vmatprep.subr.bf16.mxu0 %v1565
    %2049 = vmatpush1.bf16.msra.mxu0 %v1564
    %2050 = vmatprep.subr.bf16.mxu0 %v1569
    %2051 = vmatpush1.bf16.msra.mxu0 %v1568
    %2052 = vmatprep.mubr.bf16.mxu0 %v455
    %2053 = vmatmul.mubr.bf16.gmra.mrb[0].mxu0 %v454
    %v2054 = vpop.f32.mrb[0].mxu0
    %v2055 = vadd.f32 %v723, %v2054
    %v2056 = vpop.f32.mrb[0].mxu0
    %v2057 = vadd.f32 %v727, %v2056
    %v2058 = vpop.f32.mrb[0].mxu0
    %v2059 = vpop.f32.mrb[0].mxu0
    %2060 = vdwg.mxu0
    %2061 = vmatprep.subr.bf16.mxu0 %v1573
    %2062 = vmatpush1.bf16.msra.mxu0 %v1572
    %2063 = vmatprep.subr.bf16.mxu0 %v1577
    %2064 = vmatpush1.bf16.msra.mxu0 %v1576
    %2065 = vmatprep.subr.bf16.mxu0 %v1581
    %2066 = vmatpush1.bf16.msra.mxu0 %v1580
    %2067 = vmatprep.subr.bf16.mxu0 %v1585
    %2068 = vmatpush1.bf16.msra.mxu0 %v1584
    %2069 = vmatprep.subr.bf16.mxu0 %v1589
    %2070 = vmatpush1.bf16.msra.mxu0 %v1588
    %2071 = vmatprep.subr.bf16.mxu0 %v1593
    %2072 = vmatpush1.bf16.msra.mxu0 %v1592
    %2073 = vmatprep.subr.bf16.mxu0 %v1597
    %2074 = vmatpush1.bf16.msra.mxu0 %v1596
    %2075 = vmatprep.subr.bf16.mxu0 %v1601
    %2076 = vmatpush1.bf16.msra.mxu0 %v1600
    %2077 = vmatprep.subr.bf16.mxu0 %v1605
    %2078 = vmatpush1.bf16.msra.mxu0 %v1604
    %2079 = vmatprep.subr.bf16.mxu0 %v1609
    %2080 = vmatpush1.bf16.msra.mxu0 %v1608
    %2081 = vmatprep.subr.bf16.mxu0 %v1613
    %2082 = vmatpush1.bf16.msra.mxu0 %v1612
    %2083 = vmatprep.subr.bf16.mxu0 %v1617
    %2084 = vmatpush1.bf16.msra.mxu0 %v1616
    %2085 = vmatprep.subr.bf16.mxu0 %v1621
    %2086 = vmatpush1.bf16.msra.mxu0 %v1620
    %2087 = vmatprep.subr.bf16.mxu0 %v1625
    %2088 = vmatpush1.bf16.msra.mxu0 %v1624
    %2089 = vmatprep.subr.bf16.mxu0 %v1629
    %2090 = vmatpush1.bf16.msra.mxu0 %v1628
    %2091 = vmatprep.subr.bf16.mxu0 %v1633
    %2092 = vmatpush1.bf16.msra.mxu0 %v1632
    %2093 = vmatprep.mubr.bf16.mxu0 %v457
    %2094 = vmatmul.mubr.bf16.gmra.mrb[0].mxu0 %v456
    %v2095 = vpop.f32.mrb[0].mxu0
    %v2096 = vadd.f32 %v2055, %v2095
    %v2097 = vpop.f32.mrb[0].mxu0
    %v2098 = vadd.f32 %v2057, %v2097
    %v2099 = vpop.f32.mrb[0].mxu0
    %v2100 = vpop.f32.mrb[0].mxu0
    %2101 = vdwg.mxu0
    %2102 = vmatprep.subr.bf16.mxu0 %v1637
    %2103 = vmatpush1.bf16.msra.mxu0 %v1636
    %2104 = vmatprep.subr.bf16.mxu0 %v1641
    %2105 = vmatpush1.bf16.msra.mxu0 %v1640
    %2106 = vmatprep.subr.bf16.mxu0 %v1645
    %2107 = vmatpush1.bf16.msra.mxu0 %v1644
    %2108 = vmatprep.subr.bf16.mxu0 %v1649
    %2109 = vmatpush1.bf16.msra.mxu0 %v1648
    %2110 = vmatprep.subr.bf16.mxu0 %v1653
    %2111 = vmatpush1.bf16.msra.mxu0 %v1652
    %2112 = vmatprep.subr.bf16.mxu0 %v1657
    %2113 = vmatpush1.bf16.msra.mxu0 %v1656
    %2114 = vmatprep.subr.bf16.mxu0 %v1661
    %2115 = vmatpush1.bf16.msra.mxu0 %v1660
    %2116 = vmatprep.subr.bf16.mxu0 %v1665
    %2117 = vmatpush1.bf16.msra.mxu0 %v1664
    %2118 = vmatprep.subr.bf16.mxu0 %v1669
    %2119 = vmatpush1.bf16.msra.mxu0 %v1668
    %2120 = vmatprep.subr.bf16.mxu0 %v1673
    %2121 = vmatpush1.bf16.msra.mxu0 %v1672
    %2122 = vmatprep.subr.bf16.mxu0 %v1677
    %2123 = vmatpush1.bf16.msra.mxu0 %v1676
    %2124 = vmatprep.subr.bf16.mxu0 %v1681
    %2125 = vmatpush1.bf16.msra.mxu0 %v1680
    %2126 = vmatprep.subr.bf16.mxu0 %v1685
    %2127 = vmatpush1.bf16.msra.mxu0 %v1684
    %2128 = vmatprep.subr.bf16.mxu0 %v1689
    %2129 = vmatpush1.bf16.msra.mxu0 %v1688
    %2130 = vmatprep.subr.bf16.mxu0 %v1693
    %2131 = vmatpush1.bf16.msra.mxu0 %v1692
    %2132 = vmatprep.subr.bf16.mxu0 %v1697
    %2133 = vmatpush1.bf16.msra.mxu0 %v1696
    %2134 = vmatprep.mubr.bf16.mxu0 %v459
    %2135 = vmatmul.mubr.bf16.gmra.mrb[0].mxu0 %v458
    %v2136 = vpop.f32.mrb[0].mxu0
    %v2137 = vadd.f32 %v2096, %v2136
    %v2138 = vpop.f32.mrb[0].mxu0
    %v2139 = vadd.f32 %v2098, %v2138
    %v2140 = vpop.f32.mrb[0].mxu0
    %v2141 = vpop.f32.mrb[0].mxu0
    %2142 = vdwg.mxu0
    %2143 = vmatprep.subr.bf16.mxu0 %v1701
    %2144 = vmatpush1.bf16.msra.mxu0 %v1700
    %2145 = vmatprep.subr.bf16.mxu0 %v1705
    %2146 = vmatpush1.bf16.msra.mxu0 %v1704
    %2147 = vmatprep.subr.bf16.mxu0 %v1709
    %2148 = vmatpush1.bf16.msra.mxu0 %v1708
    %2149 = vmatprep.subr.bf16.mxu0 %v1713
    %2150 = vmatpush1.bf16.msra.mxu0 %v1712
    %2151 = vmatprep.subr.bf16.mxu0 %v1717
    %2152 = vmatpush1.bf16.msra.mxu0 %v1716
    %2153 = vmatprep.subr.bf16.mxu0 %v1721
    %2154 = vmatpush1.bf16.msra.mxu0 %v1720
    %2155 = vmatprep.subr.bf16.mxu0 %v1725
    %2156 = vmatpush1.bf16.msra.mxu0 %v1724
    %2157 = vmatprep.subr.bf16.mxu0 %v1729
    %2158 = vmatpush1.bf16.msra.mxu0 %v1728
    %2159 = vmatprep.subr.bf16.mxu0 %v1733
    %2160 = vmatpush1.bf16.msra.mxu0 %v1732
    %2161 = vmatprep.subr.bf16.mxu0 %v1737
    %2162 = vmatpush1.bf16.msra.mxu0 %v1736
    %2163 = vmatprep.subr.bf16.mxu0 %v1741
    %2164 = vmatpush1.bf16.msra.mxu0 %v1740
    %2165 = vmatprep.subr.bf16.mxu0 %v1745
    %2166 = vmatpush1.bf16.msra.mxu0 %v1744
    %2167 = vmatprep.subr.bf16.mxu0 %v1749
    %2168 = vmatpush1.bf16.msra.mxu0 %v1748
    %2169 = vmatprep.subr.bf16.mxu0 %v1753
    %2170 = vmatpush1.bf16.msra.mxu0 %v1752
    %2171 = vmatprep.subr.bf16.mxu0 %v1757
    %2172 = vmatpush1.bf16.msra.mxu0 %v1756
    %2173 = vmatprep.subr.bf16.mxu0 %v1761
    %2174 = vmatpush1.bf16.msra.mxu0 %v1760
    %2175 = vmatprep.mubr.bf16.mxu0 %v461
    %2176 = vmatmul.mubr.bf16.gmra.mrb[0].mxu0 %v460
    %v2177 = vpop.f32.mrb[0].mxu0
    %v2178 = vadd.f32 %v2137, %v2177
    %v2179 = vpop.f32.mrb[0].mxu0
    %v2180 = vadd.f32 %v2139, %v2179
    %v2181 = vpop.f32.mrb[0].mxu0
    %v2182 = vpop.f32.mrb[0].mxu0
    %2183 = vdwg.mxu0
    %2184 = vmatprep.subr.bf16.mxu0 %v1511
    %2185 = vmatpush1.bf16.msra.mxu0 %v1510
    %2186 = vmatprep.subr.bf16.mxu0 %v1515
    %2187 = vmatpush1.bf16.msra.mxu0 %v1514
    %2188 = vmatprep.subr.bf16.mxu0 %v1519
    %2189 = vmatpush1.bf16.msra.mxu0 %v1518
    %2190 = vmatprep.subr.bf16.mxu0 %v1523
    %2191 = vmatpush1.bf16.msra.mxu0 %v1522
    %2192 = vmatprep.subr.bf16.mxu0 %v1527
    %2193 = vmatpush1.bf16.msra.mxu0 %v1526
    %2194 = vmatprep.subr.bf16.mxu0 %v1531
    %2195 = vmatpush1.bf16.msra.mxu0 %v1530
    %2196 = vmatprep.subr.bf16.mxu0 %v1535
    %2197 = vmatpush1.bf16.msra.mxu0 %v1534
    %2198 = vmatprep.subr.bf16.mxu0 %v1539
    %2199 = vmatpush1.bf16.msra.mxu0 %v1538
    %2200 = vmatprep.subr.bf16.mxu0 %v1543
    %2201 = vmatpush1.bf16.msra.mxu0 %v1542
    %2202 = vmatprep.subr.bf16.mxu0 %v1547
    %2203 = vmatpush1.bf16.msra.mxu0 %v1546
    %2204 = vmatprep.subr.bf16.mxu0 %v1551
    %2205 = vmatpush1.bf16.msra.mxu0 %v1550
    %2206 = vmatprep.subr.bf16.mxu0 %v1555
    %2207 = vmatpush1.bf16.msra.mxu0 %v1554
    %2208 = vmatprep.subr.bf16.mxu0 %v1559
    %2209 = vmatpush1.bf16.msra.mxu0 %v1558
    %2210 = vmatprep.subr.bf16.mxu0 %v1563
    %2211 = vmatpush1.bf16.msra.mxu0 %v1562
    %2212 = vmatprep.subr.bf16.mxu0 %v1567
    %2213 = vmatpush1.bf16.msra.mxu0 %v1566
    %2214 = vmatprep.subr.bf16.mxu0 %v1571
    %2215 = vmatpush1.bf16.msra.mxu0 %v1570
    %2216 = vmatprep.mubr.bf16.mxu0 %v455
    %2217 = vmatmul.mubr.bf16.gmra.mrb[0].mxu0 %v454
    %v2218 = vpop.f32.mrb[0].mxu0
    %v2219 = vadd.f32 %v731, %v2218
    %v2220 = vpop.f32.mrb[0].mxu0
    %v2221 = vadd.f32 %v735, %v2220
    %v2222 = vpop.f32.mrb[0].mxu0
    %v2223 = vpop.f32.mrb[0].mxu0
    %2224 = vdwg.mxu0
    %2225 = vmatprep.subr.bf16.mxu0 %v1575
    %2226 = vmatpush1.bf16.msra.mxu0 %v1574
    %2227 = vmatprep.subr.bf16.mxu0 %v1579
    %2228 = vmatpush1.bf16.msra.mxu0 %v1578
    %2229 = vmatprep.subr.bf16.mxu0 %v1583
    %2230 = vmatpush1.bf16.msra.mxu0 %v1582
    %2231 = vmatprep.subr.bf16.mxu0 %v1587
    %2232 = vmatpush1.bf16.msra.mxu0 %v1586
    %2233 = vmatprep.subr.bf16.mxu0 %v1591
    %2234 = vmatpush1.bf16.msra.mxu0 %v1590
    %2235 = vmatprep.subr.bf16.mxu0 %v1595
    %2236 = vmatpush1.bf16.msra.mxu0 %v1594
    %2237 = vmatprep.subr.bf16.mxu0 %v1599
    %2238 = vmatpush1.bf16.msra.mxu0 %v1598
    %2239 = vmatprep.subr.bf16.mxu0 %v1603
    %2240 = vmatpush1.bf16.msra.mxu0 %v1602
    %2241 = vmatprep.subr.bf16.mxu0 %v1607
    %2242 = vmatpush1.bf16.msra.mxu0 %v1606
    %2243 = vmatprep.subr.bf16.mxu0 %v1611
    %2244 = vmatpush1.bf16.msra.mxu0 %v1610
    %2245 = vmatprep.subr.bf16.mxu0 %v1615
    %2246 = vmatpush1.bf16.msra.mxu0 %v1614
    %2247 = vmatprep.subr.bf16.mxu0 %v1619
    %2248 = vmatpush1.bf16.msra.mxu0 %v1618
    %2249 = vmatprep.subr.bf16.mxu0 %v1623
    %2250 = vmatpush1.bf16.msra.mxu0 %v1622
    %2251 = vmatprep.subr.bf16.mxu0 %v1627
    %2252 = vmatpush1.bf16.msra.mxu0 %v1626
    %2253 = vmatprep.subr.bf16.mxu0 %v1631
    %2254 = vmatpush1.bf16.msra.mxu0 %v1630
    %2255 = vmatprep.subr.bf16.mxu0 %v1635
    %2256 = vmatpush1.bf16.msra.mxu0 %v1634
    %2257 = vmatprep.mubr.bf16.mxu0 %v457
    %2258 = vmatmul.mubr.bf16.gmra.mrb[0].mxu0 %v456
    %v2259 = vpop.f32.mrb[0].mxu0
    %v2260 = vadd.f32 %v2219, %v2259
    %v2261 = vpop.f32.mrb[0].mxu0
    %v2262 = vadd.f32 %v2221, %v2261
    %v2263 = vpop.f32.mrb[0].mxu0
    %v2264 = vpop.f32.mrb[0].mxu0
    %2265 = vdwg.mxu0
    %2266 = vmatprep.subr.bf16.mxu0 %v1639
    %2267 = vmatpush1.bf16.msra.mxu0 %v1638
    %2268 = vmatprep.subr.bf16.mxu0 %v1643
    %2269 = vmatpush1.bf16.msra.mxu0 %v1642
    %2270 = vmatprep.subr.bf16.mxu0 %v1647
    %2271 = vmatpush1.bf16.msra.mxu0 %v1646
    %2272 = vmatprep.subr.bf16.mxu0 %v1651
    %2273 = vmatpush1.bf16.msra.mxu0 %v1650
    %2274 = vmatprep.subr.bf16.mxu0 %v1655
    %2275 = vmatpush1.bf16.msra.mxu0 %v1654
    %2276 = vmatprep.subr.bf16.mxu0 %v1659
    %2277 = vmatpush1.bf16.msra.mxu0 %v1658
    %2278 = vmatprep.subr.bf16.mxu0 %v1663
    %2279 = vmatpush1.bf16.msra.mxu0 %v1662
    %2280 = vmatprep.subr.bf16.mxu0 %v1667
    %2281 = vmatpush1.bf16.msra.mxu0 %v1666
    %2282 = vmatprep.subr.bf16.mxu0 %v1671
    %2283 = vmatpush1.bf16.msra.mxu0 %v1670
    %2284 = vmatprep.subr.bf16.mxu0 %v1675
    %2285 = vmatpush1.bf16.msra.mxu0 %v1674
    %2286 = vmatprep.subr.bf16.mxu0 %v1679
    %2287 = vmatpush1.bf16.msra.mxu0 %v1678
    %2288 = vmatprep.subr.bf16.mxu0 %v1683
    %2289 = vmatpush1.bf16.msra.mxu0 %v1682
    %2290 = vmatprep.subr.bf16.mxu0 %v1687
    %2291 = vmatpush1.bf16.msra.mxu0 %v1686
    %2292 = vmatprep.subr.bf16.mxu0 %v1691
    %2293 = vmatpush1.bf16.msra.mxu0 %v1690
    %2294 = vmatprep.subr.bf16.mxu0 %v1695
    %2295 = vmatpush1.bf16.msra.mxu0 %v1694
    %2296 = vmatprep.subr.bf16.mxu0 %v1699
    %2297 = vmatpush1.bf16.msra.mxu0 %v1698
    %2298 = vmatprep.mubr.bf16.mxu0 %v459
    %2299 = vmatmul.mubr.bf16.gmra.mrb[0].mxu0 %v458
    %v2300 = vpop.f32.mrb[0].mxu0
    %v2301 = vadd.f32 %v2260, %v2300
    %v2302 = vpop.f32.mrb[0].mxu0
    %v2303 = vadd.f32 %v2262, %v2302
    %v2304 = vpop.f32.mrb[0].mxu0
    %v2305 = vpop.f32.mrb[0].mxu0
    %2306 = vdwg.mxu0
    %2307 = vmatprep.subr.bf16.mxu0 %v1703
    %2308 = vmatpush1.bf16.msra.mxu0 %v1702
    %2309 = vmatprep.subr.bf16.mxu0 %v1707
    %2310 = vmatpush1.bf16.msra.mxu0 %v1706
    %2311 = vmatprep.subr.bf16.mxu0 %v1711
    %2312 = vmatpush1.bf16.msra.mxu0 %v1710
    %2313 = vmatprep.subr.bf16.mxu0 %v1715
    %2314 = vmatpush1.bf16.msra.mxu0 %v1714
    %2315 = vmatprep.subr.bf16.mxu0 %v1719
    %2316 = vmatpush1.bf16.msra.mxu0 %v1718
    %2317 = vmatprep.subr.bf16.mxu0 %v1723
    %2318 = vmatpush1.bf16.msra.mxu0 %v1722
    %2319 = vmatprep.subr.bf16.mxu0 %v1727
    %2320 = vmatpush1.bf16.msra.mxu0 %v1726
    %2321 = vmatprep.subr.bf16.mxu0 %v1731
    %2322 = vmatpush1.bf16.msra.mxu0 %v1730
    %2323 = vmatprep.subr.bf16.mxu0 %v1735
    %2324 = vmatpush1.bf16.msra.mxu0 %v1734
    %2325 = vmatprep.subr.bf16.mxu0 %v1739
    %2326 = vmatpush1.bf16.msra.mxu0 %v1738
    %2327 = vmatprep.subr.bf16.mxu0 %v1743
    %2328 = vmatpush1.bf16.msra.mxu0 %v1742
    %2329 = vmatprep.subr.bf16.mxu0 %v1747
    %2330 = vmatpush1.bf16.msra.mxu0 %v1746
    %2331 = vmatprep.subr.bf16.mxu0 %v1751
    %2332 = vmatpush1.bf16.msra.mxu0 %v1750
    %2333 = vmatprep.subr.bf16.mxu0 %v1755
    %2334 = vmatpush1.bf16.msra.mxu0 %v1754
    %2335 = vmatprep.subr.bf16.mxu0 %v1759
    %2336 = vmatpush1.bf16.msra.mxu0 %v1758
    %2337 = vmatprep.subr.bf16.mxu0 %v1763
    %2338 = vmatpush1.bf16.msra.mxu0 %v1762
    %2339 = vmatprep.mubr.bf16.mxu0 %v461
    %2340 = vmatmul.mubr.bf16.gmra.mrb[0].mxu0 %v460
    %v2341 = vpop.f32.mrb[0].mxu0
    %v2342 = vadd.f32 %v2301, %v2341
    %v2343 = vpop.f32.mrb[0].mxu0
    %v2344 = vadd.f32 %v2303, %v2343
    %v2345 = vpop.f32.mrb[0].mxu0
    %v2346 = vpop.f32.mrb[0].mxu0
    %2347 = vdwg.mxu0
    %v2348 = vmax.f32 %v2178, 0.0
    %v2349 = vmax.f32 %v2180, 0.0
    %v2350 = vmax.f32 %v2342, 0.0
    %v2351 = vmax.f32 %v2344, 0.0
    %v2352 = vpack.c.bf16 %v2348, %v2348
    %v2353 = vpack.c.bf16 %v2349, %v2349
    %v2354 = vpack.c.bf16 %v2350, %v2350
    %v2355 = vpack.c.bf16 %v2351, %v2351
    %v2360 = vunpack.c.l.b16 %v2352
    %v2361 = vunpack.c.l.b16 %v2353
    %v2362 = vunpack.c.l.b16 %v2354
    %v2363 = vunpack.c.l.b16 %v2355
    %v2364 = vpack.c.b16 %v2361, %v2360
    %v2365 = vpack.c.b16 %v2363, %v2362
    %2368 = vst [vmem:[#allocation10] sm:$0xff] %v2364
    %2369 = vst [vmem:[#allocation10 + $0x8] sm:$0xff] %v2365
    // Predicated region
    $region38: #{tpu_custom_call.1} parent=1 // pred_check
      _
    $region39: #{tpu_custom_call.1} parent=1 // pred_check_branch
      %2371 = sbr.rel (0) target = $region41
    $region40: #{tpu_custom_call.1} parent=1 // pred_region
      %s2373 = ssub.s32 256, 256
      %2374 = vsyncadd [#allocation4], %s2373
      %s2376 = sshll.u32 [#allocation10], 4
      %s2377 = int_to_ptr.vmem [resolvable:$true] %s2376
      %2379 = dma.vmem_to_hbm [thread:$0]  %s2377, 256, %s5, [#allocation4]
    $region41: #{tpu_custom_call.1} parent=1 // pred_fallthru
      _
    // Predicated region
    $region42: #{tpu_custom_call.1} parent=1 // pred_check
      _
    $region43: #{tpu_custom_call.1} parent=1 // pred_check_branch
      %2381 = sbr.rel (0) target = $region45
    $region44: #{tpu_custom_call.1} parent=1 // pred_region
      %2382 = dma.done [#allocation4], 256
    $region45: #{tpu_custom_call.1} parent=1 // pred_fallthru
      _
    %2383 = vsyncpa [#allocation3], 1
    %2384 = vsyncpa [#allocation6], 1
    %2385 = vsyncpa [#allocation9], 1
    %2386 = vsyncpa [#allocation4], 1

</llo_original>
